<compile_context>
chip_gen: v7x
topology: tpu7x:2x2x1
jax: 0.10.0
libtpu: 0.0.40
codegen_flags: <defaults>
</compile_context>

<pallas_src>
import functools

import jax
import jax.numpy as jnp
from jax.experimental import pallas as pl
from jax.experimental.pallas import tpu as pltpu


def _epeg_kernel(x_ref, wq_ref, wk_ref, wv_ref, wo_ref,
                 bq_ref, bk_ref, bv_ref, bo_ref,
                 cw_ref, cb_ref, out_ref, *, n_head, d_k, conv_k):
    # x_ref  : (1, N, D) VMEM        w*_ref : (D, D) VMEM (pre-transposed: y = x @ w + b)
    # b*_ref : (1, D)   VMEM         cw_ref : (conv_k,) SMEM, cb_ref: (1,) SMEM
    # out_ref: (1, N, D) VMEM
    n = x_ref.shape[1]
    d = x_ref.shape[2]
    pad = (conv_k - 1) // 2
    scale = 1.0 / (float(d_k) ** 0.5)

    x = x_ref[0].astype(jnp.float32)                                    # (N, D)

    def proj(w_ref, b_ref):
        return (jnp.dot(x, w_ref[...].astype(jnp.float32),
                        preferred_element_type=jnp.float32)
                + b_ref[...].astype(jnp.float32))

    q = proj(wq_ref, bq_ref)                                            # (N, D)
    k = proj(wk_ref, bk_ref)
    v = proj(wv_ref, bv_ref)

    cb = cb_ref[0]
    zrow = jnp.zeros((1, n), jnp.float32)

    acc = jnp.zeros((n, d), jnp.float32)
    for h in range(n_head):                                             # static unroll
        lo = h * d_k
        qh = q[:, lo:lo + d_k]                                          # (N, dk)
        kh = k[:, lo:lo + d_k]
        vh = v[:, lo:lo + d_k]

        # scores = qh @ kh^T / sqrt(dk)   (contract last dims, no explicit T)
        s = jax.lax.dot_general(qh, kh, (((1,), (1,)), ((), ())),
                                preferred_element_type=jnp.float32) * scale  # (N, N)

        # Conv1d over the flattened N*N score sequence without reshaping:
        # a shift of +/-delta in flattened order is an in-row shift that
        # borrows the first/last |delta| columns from the next/previous row.
        s_next = jnp.concatenate([s[1:, :], zrow], axis=0)   # s_next[i] = s[i+1] (last row 0)
        s_prev = jnp.concatenate([zrow, s[:-1, :]], axis=0)  # s_prev[i] = s[i-1] (first row 0)

        conv = jnp.zeros((n, n), jnp.float32)
        for t in range(conv_k):
            delta = t - pad
            if delta == 0:
                contrib = s
            elif delta > 0:
                contrib = jnp.concatenate(
                    [s[:, delta:], s_next[:, :delta]], axis=1)
            else:
                a = -delta
                contrib = jnp.concatenate(
                    [s_prev[:, n - a:], s[:, :n - a]], axis=1)
            conv = conv + cw_ref[t] * contrib
        conv = conv + cb

        # softmax(scores + conv_scores); dropout = identity in eval mode.
        logits = s + conv
        m = jnp.max(logits, axis=-1, keepdims=True)
        p = jnp.exp(logits - m)
        attn = p / jnp.sum(p, axis=-1, keepdims=True)                   # (N, N)

        head = jnp.dot(attn, vh, preferred_element_type=jnp.float32)    # (N, dk)
        # Fold this head directly into the output projection (no concat).
        acc = acc + jnp.dot(head, wo_ref[lo:lo + d_k, :].astype(jnp.float32),
                            preferred_element_type=jnp.float32)

    out = acc + bo_ref[...].astype(jnp.float32)
    # TODO(synk): training-mode dropout (pltpu PRNG) is omitted; eval semantics.
    out_ref[0] = out.astype(out_ref.dtype)


def epeg_forward(x, params, *, n_head, conv_kernel_size=7):
    """x: (B, L2, M, M, D).  params: wq/wk/wv/wo as (D, D) already transposed
    (so y = x @ w + b), biases (D,), conv_w (conv_k,), conv_b (1,)."""
    b, l2, m, m2, d = x.shape
    assert m == m2 and d % n_head == 0
    n = m * m
    pad = (conv_kernel_size - 1) // 2
    assert n > pad, "need M*M > conv pad so the conv only touches adjacent rows"
    bl = b * l2
    d_k = d // n_head

    x_flat = x.reshape(bl, n, d)
    bq = params["bq"].reshape(1, d)
    bk = params["bk"].reshape(1, d)
    bv = params["bv"].reshape(1, d)
    bo = params["bo"].reshape(1, d)
    cw = params["conv_w"].reshape(conv_kernel_size).astype(jnp.float32)
    cb = params["conv_b"].reshape(1).astype(jnp.float32)

    kernel = functools.partial(_epeg_kernel, n_head=n_head, d_k=d_k,
                               conv_k=conv_kernel_size)

    wspec = pl.BlockSpec((d, d), lambda i: (0, 0))        # resident, no re-DMA
    bspec = pl.BlockSpec((1, d), lambda i: (0, 0))
    smem_spec = pl.BlockSpec(memory_space=pltpu.MemorySpace.SMEM)

    out = pl.pallas_call(
        kernel,
        out_shape=jax.ShapeDtypeStruct((bl, n, d), x.dtype),
        grid_spec=pl.GridSpec(
            grid=(bl,),
            in_specs=[
                pl.BlockSpec((1, n, d), lambda i: (i, 0, 0)),   # x
                wspec, wspec, wspec, wspec,                     # wq wk wv wo
                bspec, bspec, bspec, bspec,                     # bq bk bv bo
                smem_spec, smem_spec,                           # conv_w conv_b
            ],
            out_specs=pl.BlockSpec((1, n, d), lambda i: (i, 0, 0)),
        ),
        compiler_params=pltpu.CompilerParams(
            dimension_semantics=("parallel",)),
    )(x_flat, params["wq"], params["wk"], params["wv"], params["wo"],
      bq, bk, bv, bo, cw, cb)
    return out.reshape(b, l2, m, m, d)


def epeg_reference(x, params, *, n_head, conv_kernel_size):
    """Pure-JAX mirror of the PyTorch forward (dropout = identity)."""
    hp = jax.lax.Precision.HIGHEST
    b, l2, m, _, d = x.shape
    n, bl, d_k = m * m, b * l2, d // n_head
    pad = (conv_kernel_size - 1) // 2

    xf = x.reshape(bl, n, d)
    q = jnp.einsum("bnd,de->bne", xf, params["wq"], precision=hp) + params["bq"]
    k = jnp.einsum("bnd,de->bne", xf, params["wk"], precision=hp) + params["bk"]
    v = jnp.einsum("bnd,de->bne", xf, params["wv"], precision=hp) + params["bv"]

    def split_heads(t):
        return t.reshape(bl, n, n_head, d_k).transpose(0, 2, 1, 3)      # (BL,H,N,dk)

    qh, kh, vh = split_heads(q), split_heads(k), split_heads(v)
    scores = jnp.einsum("bhnd,bhmd->bhnm", qh, kh, precision=hp) / d_k ** 0.5

    sr = scores.reshape(bl * n_head, 1, n * n)
    conv = jax.lax.conv_general_dilated(
        sr, params["conv_w"].reshape(1, 1, conv_kernel_size),
        window_strides=(1,), padding=[(pad, pad)],
        dimension_numbers=("NCH", "OIH", "NCH"), precision=hp)
    conv = conv + params["conv_b"][0]
    conv = conv.reshape(bl, n_head, n, n)

    attn = jax.nn.softmax(scores + conv, axis=-1)
    out_h = jnp.einsum("bhnm,bhmd->bhnd", attn, vh, precision=hp)
    out = (jnp.einsum("bnd,de->bne",
                      out_h.transpose(0, 2, 1, 3).reshape(bl, n, d),
                      params["wo"], precision=hp)
           + params["bo"])
    return out.reshape(b, l2, m, m, d)


if __name__ == "__main__":
    key = jax.random.PRNGKey(0)
    B, L2, M = 1, 2, 4
    d_model, n_head, conv_k = 64, 4, 7

    keys = jax.random.split(key, 11)
    wscale = d_model ** -0.5
    x = jax.random.normal(keys[0], (B, L2, M, M, d_model), jnp.float32)
    params = {
        "wq": jax.random.normal(keys[1], (d_model, d_model), jnp.float32) * wscale,
        "wk": jax.random.normal(keys[2], (d_model, d_model), jnp.float32) * wscale,
        "wv": jax.random.normal(keys[3], (d_model, d_model), jnp.float32) * wscale,
        "wo": jax.random.normal(keys[4], (d_model, d_model), jnp.float32) * wscale,
        "bq": jax.random.normal(keys[5], (d_model,), jnp.float32) * 0.1,
        "bk": jax.random.normal(keys[6], (d_model,), jnp.float32) * 0.1,
        "bv": jax.random.normal(keys[7], (d_model,), jnp.float32) * 0.1,
        "bo": jax.random.normal(keys[8], (d_model,), jnp.float32) * 0.1,
        "conv_w": jax.random.normal(keys[9], (conv_k,), jnp.float32) * 0.1,
        "conv_b": jax.random.normal(keys[10], (1,), jnp.float32) * 0.1,
    }

    out = epeg_forward(x, params, n_head=n_head, conv_kernel_size=conv_k)
    jax.block_until_ready(out)
    assert out.shape == (B, L2, M, M, d_model)

    ref = epeg_reference(x, params, n_head=n_head, conv_kernel_size=conv_k)
    err = float(jnp.max(jnp.abs(out - ref)))
    assert jnp.allclose(out, ref, atol=5e-3, rtol=5e-3), f"mismatch, max abs err={err}"

    print("KERNEL_OK")
</pallas_src>

<mosaic_0001>
module attributes {stable_mosaic.version = 11 : i64} {
  func.func @_epeg_kernel(%arg0: i32, %arg1: memref<1x16x64xf32, #tpu.memory_space<vmem>>, %arg2: memref<64x64xf32, #tpu.memory_space<vmem>>, %arg3: memref<64x64xf32, #tpu.memory_space<vmem>>, %arg4: memref<64x64xf32, #tpu.memory_space<vmem>>, %arg5: memref<64x64xf32, #tpu.memory_space<vmem>>, %arg6: memref<1x64xf32, #tpu.memory_space<vmem>>, %arg7: memref<1x64xf32, #tpu.memory_space<vmem>>, %arg8: memref<1x64xf32, #tpu.memory_space<vmem>>, %arg9: memref<1x64xf32, #tpu.memory_space<vmem>>, %arg10: memref<7xf32, #tpu.memory_space<smem>>, %arg11: memref<1xf32, #tpu.memory_space<smem>>, %arg12: memref<1x16x64xf32, #tpu.memory_space<vmem>>) attributes {dimension_semantics = [#tpu.dimension_semantics<parallel>], iteration_bounds = array<i64: 2>, scalar_prefetch = 0 : i64, scratch_operands = 0 : i64, tpu.core_type = #tpu.core_type<tc>, window_params = [{transform_indices = @transform_0, window_bounds = array<i64: 1, 16, 64>}, {pipeline_mode = #tpu.pipeline_mode<synchronous>, transform_indices = @transform_1, window_bounds = array<i64: 64, 64>}, {pipeline_mode = #tpu.pipeline_mode<synchronous>, transform_indices = @transform_2, window_bounds = array<i64: 64, 64>}, {pipeline_mode = #tpu.pipeline_mode<synchronous>, transform_indices = @transform_3, window_bounds = array<i64: 64, 64>}, {pipeline_mode = #tpu.pipeline_mode<synchronous>, transform_indices = @transform_4, window_bounds = array<i64: 64, 64>}, {pipeline_mode = #tpu.pipeline_mode<synchronous>, transform_indices = @transform_5, window_bounds = array<i64: 1, 64>}, {pipeline_mode = #tpu.pipeline_mode<synchronous>, transform_indices = @transform_6, window_bounds = array<i64: 1, 64>}, {pipeline_mode = #tpu.pipeline_mode<synchronous>, transform_indices = @transform_7, window_bounds = array<i64: 1, 64>}, {pipeline_mode = #tpu.pipeline_mode<synchronous>, transform_indices = @transform_8, window_bounds = array<i64: 1, 64>}, {transform_indices = @transform_9, window_bounds = array<i64: 7>}, {transform_indices = @transform_10, window_bounds = array<i64: 1>}, {transform_indices = @transform_11, window_bounds = array<i64: 1, 16, 64>}]} {
    %c0 = arith.constant 0 : index
    %c0_0 = arith.constant 0 : index
    %c0_1 = arith.constant 0 : index
    %0 = vector.load %arg1[%c0, %c0_0, %c0_1] : memref<1x16x64xf32, #tpu.memory_space<vmem>>, vector<1x16x64xf32>
    %1 = vector.shape_cast %0 : vector<1x16x64xf32> to vector<16x64xf32>
    %c0_2 = arith.constant 0 : index
    %c0_3 = arith.constant 0 : index
    %2 = vector.load %arg2[%c0_2, %c0_3] : memref<64x64xf32, #tpu.memory_space<vmem>>, vector<64x64xf32>
    %cst = arith.constant dense<0.000000e+00> : vector<16x64xf32>
    %3 = tpu.matmul %1, %2, %cst {dimension_numbers = #tpu.dot_dimension_numbers<[1], [0], [0], [1], [0, 0, 1, 1], [], []>} : vector<16x64xf32>, vector<64x64xf32>, vector<16x64xf32> -> vector<16x64xf32>
    %c0_4 = arith.constant 0 : index
    %c0_5 = arith.constant 0 : index
    %4 = vector.load %arg6[%c0_4, %c0_5] : memref<1x64xf32, #tpu.memory_space<vmem>>, vector<1x64xf32>
    %5 = vector.broadcast %4 : vector<1x64xf32> to vector<16x64xf32>
    %6 = arith.addf %3, %5 : vector<16x64xf32>
    %c0_6 = arith.constant 0 : index
    %c0_7 = arith.constant 0 : index
    %7 = vector.load %arg3[%c0_6, %c0_7] : memref<64x64xf32, #tpu.memory_space<vmem>>, vector<64x64xf32>
    %cst_8 = arith.constant dense<0.000000e+00> : vector<16x64xf32>
    %8 = tpu.matmul %1, %7, %cst_8 {dimension_numbers = #tpu.dot_dimension_numbers<[1], [0], [0], [1], [0, 0, 1, 1], [], []>} : vector<16x64xf32>, vector<64x64xf32>, vector<16x64xf32> -> vector<16x64xf32>
    %c0_9 = arith.constant 0 : index
    %c0_10 = arith.constant 0 : index
    %9 = vector.load %arg7[%c0_9, %c0_10] : memref<1x64xf32, #tpu.memory_space<vmem>>, vector<1x64xf32>
    %10 = vector.broadcast %9 : vector<1x64xf32> to vector<16x64xf32>
    %11 = arith.addf %8, %10 : vector<16x64xf32>
    %c0_11 = arith.constant 0 : index
    %c0_12 = arith.constant 0 : index
    %12 = vector.load %arg4[%c0_11, %c0_12] : memref<64x64xf32, #tpu.memory_space<vmem>>, vector<64x64xf32>
    %cst_13 = arith.constant dense<0.000000e+00> : vector<16x64xf32>
    %13 = tpu.matmul %1, %12, %cst_13 {dimension_numbers = #tpu.dot_dimension_numbers<[1], [0], [0], [1], [0, 0, 1, 1], [], []>} : vector<16x64xf32>, vector<64x64xf32>, vector<16x64xf32> -> vector<16x64xf32>
    %c0_14 = arith.constant 0 : index
    %c0_15 = arith.constant 0 : index
    %14 = vector.load %arg8[%c0_14, %c0_15] : memref<1x64xf32, #tpu.memory_space<vmem>>, vector<1x64xf32>
    %15 = vector.broadcast %14 : vector<1x64xf32> to vector<16x64xf32>
    %16 = arith.addf %13, %15 : vector<16x64xf32>
    %c0_16 = arith.constant 0 : index
    %17 = memref.load %arg11[%c0_16] : memref<1xf32, #tpu.memory_space<smem>>
    %cst_17 = arith.constant 0.000000e+00 : f32
    %18 = vector.broadcast %cst_17 : f32 to vector<1x16xf32>
    %cst_18 = arith.constant 0.000000e+00 : f32
    %19 = vector.broadcast %cst_18 : f32 to vector<16x64xf32>
    %20 = vector.extract_strided_slice %6 {offsets = [0, 0], sizes = [16, 16], strides = [1, 1]} : vector<16x64xf32> to vector<16x16xf32>
    %21 = vector.extract_strided_slice %11 {offsets = [0, 0], sizes = [16, 16], strides = [1, 1]} : vector<16x64xf32> to vector<16x16xf32>
    %22 = vector.extract_strided_slice %16 {offsets = [0, 0], sizes = [16, 16], strides = [1, 1]} : vector<16x64xf32> to vector<16x16xf32>
    %cst_19 = arith.constant dense<0.000000e+00> : vector<16x16xf32>
    %23 = tpu.matmul %20, %21, %cst_19 {dimension_numbers = #tpu.dot_dimension_numbers<[1], [1], [0], [0], [0, 0, 1, 0], [], []>} : vector<16x16xf32>, vector<16x16xf32>, vector<16x16xf32> -> vector<16x16xf32>
    %cst_20 = arith.constant 2.500000e-01 : f32
    %24 = vector.broadcast %cst_20 : f32 to vector<16x16xf32>
    %25 = arith.mulf %23, %24 : vector<16x16xf32>
    %26 = vector.extract_strided_slice %25 {offsets = [1, 0], sizes = [15, 16], strides = [1, 1]} : vector<16x16xf32> to vector<15x16xf32>
    %27 = tpu.concatenate %26, %18 in 0 : vector<15x16xf32>, vector<1x16xf32> -> vector<16x16xf32>
    %28 = vector.extract_strided_slice %25 {offsets = [0, 0], sizes = [15, 16], strides = [1, 1]} : vector<16x16xf32> to vector<15x16xf32>
    %29 = tpu.concatenate %18, %28 in 0 : vector<1x16xf32>, vector<15x16xf32> -> vector<16x16xf32>
    %cst_21 = arith.constant 0.000000e+00 : f32
    %30 = vector.broadcast %cst_21 : f32 to vector<16x16xf32>
    %31 = vector.extract_strided_slice %29 {offsets = [0, 13], sizes = [16, 3], strides = [1, 1]} : vector<16x16xf32> to vector<16x3xf32>
    %32 = vector.extract_strided_slice %25 {offsets = [0, 0], sizes = [16, 13], strides = [1, 1]} : vector<16x16xf32> to vector<16x13xf32>
    %33 = tpu.concatenate %31, %32 in 1 : vector<16x3xf32>, vector<16x13xf32> -> vector<16x16xf32>
    %c0_22 = arith.constant 0 : index
    %34 = memref.load %arg10[%c0_22] : memref<7xf32, #tpu.memory_space<smem>>
    %35 = vector.broadcast %34 : f32 to vector<16x16xf32>
    %36 = arith.mulf %35, %33 : vector<16x16xf32>
    %37 = arith.addf %30, %36 : vector<16x16xf32>
    %38 = vector.extract_strided_slice %29 {offsets = [0, 14], sizes = [16, 2], strides = [1, 1]} : vector<16x16xf32> to vector<16x2xf32>
    %39 = vector.extract_strided_slice %25 {offsets = [0, 0], sizes = [16, 14], strides = [1, 1]} : vector<16x16xf32> to vector<16x14xf32>
    %40 = tpu.concatenate %38, %39 in 1 : vector<16x2xf32>, vector<16x14xf32> -> vector<16x16xf32>
    %c1 = arith.constant 1 : index
    %41 = memref.load %arg10[%c1] : memref<7xf32, #tpu.memory_space<smem>>
    %42 = vector.broadcast %41 : f32 to vector<16x16xf32>
    %43 = arith.mulf %42, %40 : vector<16x16xf32>
    %44 = arith.addf %37, %43 : vector<16x16xf32>
    %45 = vector.extract_strided_slice %29 {offsets = [0, 15], sizes = [16, 1], strides = [1, 1]} : vector<16x16xf32> to vector<16x1xf32>
    %46 = vector.extract_strided_slice %25 {offsets = [0, 0], sizes = [16, 15], strides = [1, 1]} : vector<16x16xf32> to vector<16x15xf32>
    %47 = tpu.concatenate %45, %46 in 1 : vector<16x1xf32>, vector<16x15xf32> -> vector<16x16xf32>
    %c2 = arith.constant 2 : index
    %48 = memref.load %arg10[%c2] : memref<7xf32, #tpu.memory_space<smem>>
    %49 = vector.broadcast %48 : f32 to vector<16x16xf32>
    %50 = arith.mulf %49, %47 : vector<16x16xf32>
    %51 = arith.addf %44, %50 : vector<16x16xf32>
    %c3 = arith.constant 3 : index
    %52 = memref.load %arg10[%c3] : memref<7xf32, #tpu.memory_space<smem>>
    %53 = vector.broadcast %52 : f32 to vector<16x16xf32>
    %54 = arith.mulf %53, %25 : vector<16x16xf32>
    %55 = arith.addf %51, %54 : vector<16x16xf32>
    %56 = vector.extract_strided_slice %25 {offsets = [0, 1], sizes = [16, 15], strides = [1, 1]} : vector<16x16xf32> to vector<16x15xf32>
    %57 = vector.extract_strided_slice %27 {offsets = [0, 0], sizes = [16, 1], strides = [1, 1]} : vector<16x16xf32> to vector<16x1xf32>
    %58 = tpu.concatenate %56, %57 in 1 : vector<16x15xf32>, vector<16x1xf32> -> vector<16x16xf32>
    %c4 = arith.constant 4 : index
    %59 = memref.load %arg10[%c4] : memref<7xf32, #tpu.memory_space<smem>>
    %60 = vector.broadcast %59 : f32 to vector<16x16xf32>
    %61 = arith.mulf %60, %58 : vector<16x16xf32>
    %62 = arith.addf %55, %61 : vector<16x16xf32>
    %63 = vector.extract_strided_slice %25 {offsets = [0, 2], sizes = [16, 14], strides = [1, 1]} : vector<16x16xf32> to vector<16x14xf32>
    %64 = vector.extract_strided_slice %27 {offsets = [0, 0], sizes = [16, 2], strides = [1, 1]} : vector<16x16xf32> to vector<16x2xf32>
    %65 = tpu.concatenate %63, %64 in 1 : vector<16x14xf32>, vector<16x2xf32> -> vector<16x16xf32>
    %c5 = arith.constant 5 : index
    %66 = memref.load %arg10[%c5] : memref<7xf32, #tpu.memory_space<smem>>
    %67 = vector.broadcast %66 : f32 to vector<16x16xf32>
    %68 = arith.mulf %67, %65 : vector<16x16xf32>
    %69 = arith.addf %62, %68 : vector<16x16xf32>
    %70 = vector.extract_strided_slice %25 {offsets = [0, 3], sizes = [16, 13], strides = [1, 1]} : vector<16x16xf32> to vector<16x13xf32>
    %71 = vector.extract_strided_slice %27 {offsets = [0, 0], sizes = [16, 3], strides = [1, 1]} : vector<16x16xf32> to vector<16x3xf32>
    %72 = tpu.concatenate %70, %71 in 1 : vector<16x13xf32>, vector<16x3xf32> -> vector<16x16xf32>
    %c6 = arith.constant 6 : index
    %73 = memref.load %arg10[%c6] : memref<7xf32, #tpu.memory_space<smem>>
    %74 = vector.broadcast %73 : f32 to vector<16x16xf32>
    %75 = arith.mulf %74, %72 : vector<16x16xf32>
    %76 = arith.addf %69, %75 : vector<16x16xf32>
    %77 = vector.broadcast %17 : f32 to vector<16x16xf32>
    %78 = arith.addf %76, %77 : vector<16x16xf32>
    %79 = arith.addf %25, %78 : vector<16x16xf32>
    %cst_23 = arith.constant dense<0xFF800000> : vector<16xf32>
    %80 = vector.multi_reduction <maximumf>, %79, %cst_23 [1] : vector<16x16xf32> to vector<16xf32>
    %81 = vector.shape_cast %80 : vector<16xf32> to vector<16x1xf32>
    %82 = vector.broadcast %81 : vector<16x1xf32> to vector<16x16xf32>
    %83 = arith.subf %79, %82 : vector<16x16xf32>
    %84 = math.exp %83 : vector<16x16xf32>
    %cst_24 = arith.constant dense<0.000000e+00> : vector<16xf32>
    %85 = vector.multi_reduction <add>, %84, %cst_24 [1] : vector<16x16xf32> to vector<16xf32>
    %86 = vector.shape_cast %85 : vector<16xf32> to vector<16x1xf32>
    %87 = vector.broadcast %86 : vector<16x1xf32> to vector<16x16xf32>
    %88 = arith.divf %84, %87 : vector<16x16xf32>
    %cst_25 = arith.constant dense<0.000000e+00> : vector<16x16xf32>
    %89 = tpu.matmul %88, %22, %cst_25 {dimension_numbers = #tpu.dot_dimension_numbers<[1], [0], [0], [1], [0, 0, 1, 1], [], []>} : vector<16x16xf32>, vector<16x16xf32>, vector<16x16xf32> -> vector<16x16xf32>
    %c0_26 = arith.constant 0 : index
    %c0_27 = arith.constant 0 : index
    %90 = vector.load %arg5[%c0_26, %c0_27] : memref<64x64xf32, #tpu.memory_space<vmem>>, vector<16x64xf32>
    %cst_28 = arith.constant dense<0.000000e+00> : vector<16x64xf32>
    %91 = tpu.matmul %89, %90, %cst_28 {dimension_numbers = #tpu.dot_dimension_numbers<[1], [0], [0], [1], [0, 0, 1, 1], [], []>} : vector<16x16xf32>, vector<16x64xf32>, vector<16x64xf32> -> vector<16x64xf32>
    %92 = arith.addf %19, %91 : vector<16x64xf32>
    %93 = vector.extract_strided_slice %6 {offsets = [0, 16], sizes = [16, 16], strides = [1, 1]} : vector<16x64xf32> to vector<16x16xf32>
    %94 = vector.extract_strided_slice %11 {offsets = [0, 16], sizes = [16, 16], strides = [1, 1]} : vector<16x64xf32> to vector<16x16xf32>
    %95 = vector.extract_strided_slice %16 {offsets = [0, 16], sizes = [16, 16], strides = [1, 1]} : vector<16x64xf32> to vector<16x16xf32>
    %cst_29 = arith.constant dense<0.000000e+00> : vector<16x16xf32>
    %96 = tpu.matmul %93, %94, %cst_29 {dimension_numbers = #tpu.dot_dimension_numbers<[1], [1], [0], [0], [0, 0, 1, 0], [], []>} : vector<16x16xf32>, vector<16x16xf32>, vector<16x16xf32> -> vector<16x16xf32>
    %cst_30 = arith.constant 2.500000e-01 : f32
    %97 = vector.broadcast %cst_30 : f32 to vector<16x16xf32>
    %98 = arith.mulf %96, %97 : vector<16x16xf32>
    %99 = vector.extract_strided_slice %98 {offsets = [1, 0], sizes = [15, 16], strides = [1, 1]} : vector<16x16xf32> to vector<15x16xf32>
    %100 = tpu.concatenate %99, %18 in 0 : vector<15x16xf32>, vector<1x16xf32> -> vector<16x16xf32>
    %101 = vector.extract_strided_slice %98 {offsets = [0, 0], sizes = [15, 16], strides = [1, 1]} : vector<16x16xf32> to vector<15x16xf32>
    %102 = tpu.concatenate %18, %101 in 0 : vector<1x16xf32>, vector<15x16xf32> -> vector<16x16xf32>
    %cst_31 = arith.constant 0.000000e+00 : f32
    %103 = vector.broadcast %cst_31 : f32 to vector<16x16xf32>
    %104 = vector.extract_strided_slice %102 {offsets = [0, 13], sizes = [16, 3], strides = [1, 1]} : vector<16x16xf32> to vector<16x3xf32>
    %105 = vector.extract_strided_slice %98 {offsets = [0, 0], sizes = [16, 13], strides = [1, 1]} : vector<16x16xf32> to vector<16x13xf32>
    %106 = tpu.concatenate %104, %105 in 1 : vector<16x3xf32>, vector<16x13xf32> -> vector<16x16xf32>
    %c0_32 = arith.constant 0 : index
    %107 = memref.load %arg10[%c0_32] : memref<7xf32, #tpu.memory_space<smem>>
    %108 = vector.broadcast %107 : f32 to vector<16x16xf32>
    %109 = arith.mulf %108, %106 : vector<16x16xf32>
    %110 = arith.addf %103, %109 : vector<16x16xf32>
    %111 = vector.extract_strided_slice %102 {offsets = [0, 14], sizes = [16, 2], strides = [1, 1]} : vector<16x16xf32> to vector<16x2xf32>
    %112 = vector.extract_strided_slice %98 {offsets = [0, 0], sizes = [16, 14], strides = [1, 1]} : vector<16x16xf32> to vector<16x14xf32>
    %113 = tpu.concatenate %111, %112 in 1 : vector<16x2xf32>, vector<16x14xf32> -> vector<16x16xf32>
    %c1_33 = arith.constant 1 : index
    %114 = memref.load %arg10[%c1_33] : memref<7xf32, #tpu.memory_space<smem>>
    %115 = vector.broadcast %114 : f32 to vector<16x16xf32>
    %116 = arith.mulf %115, %113 : vector<16x16xf32>
    %117 = arith.addf %110, %116 : vector<16x16xf32>
    %118 = vector.extract_strided_slice %102 {offsets = [0, 15], sizes = [16, 1], strides = [1, 1]} : vector<16x16xf32> to vector<16x1xf32>
    %119 = vector.extract_strided_slice %98 {offsets = [0, 0], sizes = [16, 15], strides = [1, 1]} : vector<16x16xf32> to vector<16x15xf32>
    %120 = tpu.concatenate %118, %119 in 1 : vector<16x1xf32>, vector<16x15xf32> -> vector<16x16xf32>
    %c2_34 = arith.constant 2 : index
    %121 = memref.load %arg10[%c2_34] : memref<7xf32, #tpu.memory_space<smem>>
    %122 = vector.broadcast %121 : f32 to vector<16x16xf32>
    %123 = arith.mulf %122, %120 : vector<16x16xf32>
    %124 = arith.addf %117, %123 : vector<16x16xf32>
    %c3_35 = arith.constant 3 : index
    %125 = memref.load %arg10[%c3_35] : memref<7xf32, #tpu.memory_space<smem>>
    %126 = vector.broadcast %125 : f32 to vector<16x16xf32>
    %127 = arith.mulf %126, %98 : vector<16x16xf32>
    %128 = arith.addf %124, %127 : vector<16x16xf32>
    %129 = vector.extract_strided_slice %98 {offsets = [0, 1], sizes = [16, 15], strides = [1, 1]} : vector<16x16xf32> to vector<16x15xf32>
    %130 = vector.extract_strided_slice %100 {offsets = [0, 0], sizes = [16, 1], strides = [1, 1]} : vector<16x16xf32> to vector<16x1xf32>
    %131 = tpu.concatenate %129, %130 in 1 : vector<16x15xf32>, vector<16x1xf32> -> vector<16x16xf32>
    %c4_36 = arith.constant 4 : index
    %132 = memref.load %arg10[%c4_36] : memref<7xf32, #tpu.memory_space<smem>>
    %133 = vector.broadcast %132 : f32 to vector<16x16xf32>
    %134 = arith.mulf %133, %131 : vector<16x16xf32>
    %135 = arith.addf %128, %134 : vector<16x16xf32>
    %136 = vector.extract_strided_slice %98 {offsets = [0, 2], sizes = [16, 14], strides = [1, 1]} : vector<16x16xf32> to vector<16x14xf32>
    %137 = vector.extract_strided_slice %100 {offsets = [0, 0], sizes = [16, 2], strides = [1, 1]} : vector<16x16xf32> to vector<16x2xf32>
    %138 = tpu.concatenate %136, %137 in 1 : vector<16x14xf32>, vector<16x2xf32> -> vector<16x16xf32>
    %c5_37 = arith.constant 5 : index
    %139 = memref.load %arg10[%c5_37] : memref<7xf32, #tpu.memory_space<smem>>
    %140 = vector.broadcast %139 : f32 to vector<16x16xf32>
    %141 = arith.mulf %140, %138 : vector<16x16xf32>
    %142 = arith.addf %135, %141 : vector<16x16xf32>
    %143 = vector.extract_strided_slice %98 {offsets = [0, 3], sizes = [16, 13], strides = [1, 1]} : vector<16x16xf32> to vector<16x13xf32>
    %144 = vector.extract_strided_slice %100 {offsets = [0, 0], sizes = [16, 3], strides = [1, 1]} : vector<16x16xf32> to vector<16x3xf32>
    %145 = tpu.concatenate %143, %144 in 1 : vector<16x13xf32>, vector<16x3xf32> -> vector<16x16xf32>
    %c6_38 = arith.constant 6 : index
    %146 = memref.load %arg10[%c6_38] : memref<7xf32, #tpu.memory_space<smem>>
    %147 = vector.broadcast %146 : f32 to vector<16x16xf32>
    %148 = arith.mulf %147, %145 : vector<16x16xf32>
    %149 = arith.addf %142, %148 : vector<16x16xf32>
    %150 = vector.broadcast %17 : f32 to vector<16x16xf32>
    %151 = arith.addf %149, %150 : vector<16x16xf32>
    %152 = arith.addf %98, %151 : vector<16x16xf32>
    %cst_39 = arith.constant dense<0xFF800000> : vector<16xf32>
    %153 = vector.multi_reduction <maximumf>, %152, %cst_39 [1] : vector<16x16xf32> to vector<16xf32>
    %154 = vector.shape_cast %153 : vector<16xf32> to vector<16x1xf32>
    %155 = vector.broadcast %154 : vector<16x1xf32> to vector<16x16xf32>
    %156 = arith.subf %152, %155 : vector<16x16xf32>
    %157 = math.exp %156 : vector<16x16xf32>
    %cst_40 = arith.constant dense<0.000000e+00> : vector<16xf32>
    %158 = vector.multi_reduction <add>, %157, %cst_40 [1] : vector<16x16xf32> to vector<16xf32>
    %159 = vector.shape_cast %158 : vector<16xf32> to vector<16x1xf32>
    %160 = vector.broadcast %159 : vector<16x1xf32> to vector<16x16xf32>
    %161 = arith.divf %157, %160 : vector<16x16xf32>
    %cst_41 = arith.constant dense<0.000000e+00> : vector<16x16xf32>
    %162 = tpu.matmul %161, %95, %cst_41 {dimension_numbers = #tpu.dot_dimension_numbers<[1], [0], [0], [1], [0, 0, 1, 1], [], []>} : vector<16x16xf32>, vector<16x16xf32>, vector<16x16xf32> -> vector<16x16xf32>
    %c16 = arith.constant 16 : index
    %c0_42 = arith.constant 0 : index
    %163 = vector.load %arg5[%c16, %c0_42] : memref<64x64xf32, #tpu.memory_space<vmem>>, vector<16x64xf32>
    %cst_43 = arith.constant dense<0.000000e+00> : vector<16x64xf32>
    %164 = tpu.matmul %162, %163, %cst_43 {dimension_numbers = #tpu.dot_dimension_numbers<[1], [0], [0], [1], [0, 0, 1, 1], [], []>} : vector<16x16xf32>, vector<16x64xf32>, vector<16x64xf32> -> vector<16x64xf32>
    %165 = arith.addf %92, %164 : vector<16x64xf32>
    %166 = vector.extract_strided_slice %6 {offsets = [0, 32], sizes = [16, 16], strides = [1, 1]} : vector<16x64xf32> to vector<16x16xf32>
    %167 = vector.extract_strided_slice %11 {offsets = [0, 32], sizes = [16, 16], strides = [1, 1]} : vector<16x64xf32> to vector<16x16xf32>
    %168 = vector.extract_strided_slice %16 {offsets = [0, 32], sizes = [16, 16], strides = [1, 1]} : vector<16x64xf32> to vector<16x16xf32>
    %cst_44 = arith.constant dense<0.000000e+00> : vector<16x16xf32>
    %169 = tpu.matmul %166, %167, %cst_44 {dimension_numbers = #tpu.dot_dimension_numbers<[1], [1], [0], [0], [0, 0, 1, 0], [], []>} : vector<16x16xf32>, vector<16x16xf32>, vector<16x16xf32> -> vector<16x16xf32>
    %cst_45 = arith.constant 2.500000e-01 : f32
    %170 = vector.broadcast %cst_45 : f32 to vector<16x16xf32>
    %171 = arith.mulf %169, %170 : vector<16x16xf32>
    %172 = vector.extract_strided_slice %171 {offsets = [1, 0], sizes = [15, 16], strides = [1, 1]} : vector<16x16xf32> to vector<15x16xf32>
    %173 = tpu.concatenate %172, %18 in 0 : vector<15x16xf32>, vector<1x16xf32> -> vector<16x16xf32>
    %174 = vector.extract_strided_slice %171 {offsets = [0, 0], sizes = [15, 16], strides = [1, 1]} : vector<16x16xf32> to vector<15x16xf32>
    %175 = tpu.concatenate %18, %174 in 0 : vector<1x16xf32>, vector<15x16xf32> -> vector<16x16xf32>
    %cst_46 = arith.constant 0.000000e+00 : f32
    %176 = vector.broadcast %cst_46 : f32 to vector<16x16xf32>
    %177 = vector.extract_strided_slice %175 {offsets = [0, 13], sizes = [16, 3], strides = [1, 1]} : vector<16x16xf32> to vector<16x3xf32>
    %178 = vector.extract_strided_slice %171 {offsets = [0, 0], sizes = [16, 13], strides = [1, 1]} : vector<16x16xf32> to vector<16x13xf32>
    %179 = tpu.concatenate %177, %178 in 1 : vector<16x3xf32>, vector<16x13xf32> -> vector<16x16xf32>
    %c0_47 = arith.constant 0 : index
    %180 = memref.load %arg10[%c0_47] : memref<7xf32, #tpu.memory_space<smem>>
    %181 = vector.broadcast %180 : f32 to vector<16x16xf32>
    %182 = arith.mulf %181, %179 : vector<16x16xf32>
    %183 = arith.addf %176, %182 : vector<16x16xf32>
    %184 = vector.extract_strided_slice %175 {offsets = [0, 14], sizes = [16, 2], strides = [1, 1]} : vector<16x16xf32> to vector<16x2xf32>
    %185 = vector.extract_strided_slice %171 {offsets = [0, 0], sizes = [16, 14], strides = [1, 1]} : vector<16x16xf32> to vector<16x14xf32>
    %186 = tpu.concatenate %184, %185 in 1 : vector<16x2xf32>, vector<16x14xf32> -> vector<16x16xf32>
    %c1_48 = arith.constant 1 : index
    %187 = memref.load %arg10[%c1_48] : memref<7xf32, #tpu.memory_space<smem>>
    %188 = vector.broadcast %187 : f32 to vector<16x16xf32>
    %189 = arith.mulf %188, %186 : vector<16x16xf32>
    %190 = arith.addf %183, %189 : vector<16x16xf32>
    %191 = vector.extract_strided_slice %175 {offsets = [0, 15], sizes = [16, 1], strides = [1, 1]} : vector<16x16xf32> to vector<16x1xf32>
    %192 = vector.extract_strided_slice %171 {offsets = [0, 0], sizes = [16, 15], strides = [1, 1]} : vector<16x16xf32> to vector<16x15xf32>
    %193 = tpu.concatenate %191, %192 in 1 : vector<16x1xf32>, vector<16x15xf32> -> vector<16x16xf32>
    %c2_49 = arith.constant 2 : index
    %194 = memref.load %arg10[%c2_49] : memref<7xf32, #tpu.memory_space<smem>>
    %195 = vector.broadcast %194 : f32 to vector<16x16xf32>
    %196 = arith.mulf %195, %193 : vector<16x16xf32>
    %197 = arith.addf %190, %196 : vector<16x16xf32>
    %c3_50 = arith.constant 3 : index
    %198 = memref.load %arg10[%c3_50] : memref<7xf32, #tpu.memory_space<smem>>
    %199 = vector.broadcast %198 : f32 to vector<16x16xf32>
    %200 = arith.mulf %199, %171 : vector<16x16xf32>
    %201 = arith.addf %197, %200 : vector<16x16xf32>
    %202 = vector.extract_strided_slice %171 {offsets = [0, 1], sizes = [16, 15], strides = [1, 1]} : vector<16x16xf32> to vector<16x15xf32>
    %203 = vector.extract_strided_slice %173 {offsets = [0, 0], sizes = [16, 1], strides = [1, 1]} : vector<16x16xf32> to vector<16x1xf32>
    %204 = tpu.concatenate %202, %203 in 1 : vector<16x15xf32>, vector<16x1xf32> -> vector<16x16xf32>
    %c4_51 = arith.constant 4 : index
    %205 = memref.load %arg10[%c4_51] : memref<7xf32, #tpu.memory_space<smem>>
    %206 = vector.broadcast %205 : f32 to vector<16x16xf32>
    %207 = arith.mulf %206, %204 : vector<16x16xf32>
    %208 = arith.addf %201, %207 : vector<16x16xf32>
    %209 = vector.extract_strided_slice %171 {offsets = [0, 2], sizes = [16, 14], strides = [1, 1]} : vector<16x16xf32> to vector<16x14xf32>
    %210 = vector.extract_strided_slice %173 {offsets = [0, 0], sizes = [16, 2], strides = [1, 1]} : vector<16x16xf32> to vector<16x2xf32>
    %211 = tpu.concatenate %209, %210 in 1 : vector<16x14xf32>, vector<16x2xf32> -> vector<16x16xf32>
    %c5_52 = arith.constant 5 : index
    %212 = memref.load %arg10[%c5_52] : memref<7xf32, #tpu.memory_space<smem>>
    %213 = vector.broadcast %212 : f32 to vector<16x16xf32>
    %214 = arith.mulf %213, %211 : vector<16x16xf32>
    %215 = arith.addf %208, %214 : vector<16x16xf32>
    %216 = vector.extract_strided_slice %171 {offsets = [0, 3], sizes = [16, 13], strides = [1, 1]} : vector<16x16xf32> to vector<16x13xf32>
    %217 = vector.extract_strided_slice %173 {offsets = [0, 0], sizes = [16, 3], strides = [1, 1]} : vector<16x16xf32> to vector<16x3xf32>
    %218 = tpu.concatenate %216, %217 in 1 : vector<16x13xf32>, vector<16x3xf32> -> vector<16x16xf32>
    %c6_53 = arith.constant 6 : index
    %219 = memref.load %arg10[%c6_53] : memref<7xf32, #tpu.memory_space<smem>>
    %220 = vector.broadcast %219 : f32 to vector<16x16xf32>
    %221 = arith.mulf %220, %218 : vector<16x16xf32>
    %222 = arith.addf %215, %221 : vector<16x16xf32>
    %223 = vector.broadcast %17 : f32 to vector<16x16xf32>
    %224 = arith.addf %222, %223 : vector<16x16xf32>
    %225 = arith.addf %171, %224 : vector<16x16xf32>
    %cst_54 = arith.constant dense<0xFF800000> : vector<16xf32>
    %226 = vector.multi_reduction <maximumf>, %225, %cst_54 [1] : vector<16x16xf32> to vector<16xf32>
    %227 = vector.shape_cast %226 : vector<16xf32> to vector<16x1xf32>
    %228 = vector.broadcast %227 : vector<16x1xf32> to vector<16x16xf32>
    %229 = arith.subf %225, %228 : vector<16x16xf32>
    %230 = math.exp %229 : vector<16x16xf32>
    %cst_55 = arith.constant dense<0.000000e+00> : vector<16xf32>
    %231 = vector.multi_reduction <add>, %230, %cst_55 [1] : vector<16x16xf32> to vector<16xf32>
    %232 = vector.shape_cast %231 : vector<16xf32> to vector<16x1xf32>
    %233 = vector.broadcast %232 : vector<16x1xf32> to vector<16x16xf32>
    %234 = arith.divf %230, %233 : vector<16x16xf32>
    %cst_56 = arith.constant dense<0.000000e+00> : vector<16x16xf32>
    %235 = tpu.matmul %234, %168, %cst_56 {dimension_numbers = #tpu.dot_dimension_numbers<[1], [0], [0], [1], [0, 0, 1, 1], [], []>} : vector<16x16xf32>, vector<16x16xf32>, vector<16x16xf32> -> vector<16x16xf32>
    %c32 = arith.constant 32 : index
    %c0_57 = arith.constant 0 : index
    %236 = vector.load %arg5[%c32, %c0_57] : memref<64x64xf32, #tpu.memory_space<vmem>>, vector<16x64xf32>
    %cst_58 = arith.constant dense<0.000000e+00> : vector<16x64xf32>
    %237 = tpu.matmul %235, %236, %cst_58 {dimension_numbers = #tpu.dot_dimension_numbers<[1], [0], [0], [1], [0, 0, 1, 1], [], []>} : vector<16x16xf32>, vector<16x64xf32>, vector<16x64xf32> -> vector<16x64xf32>
    %238 = arith.addf %165, %237 : vector<16x64xf32>
    %239 = vector.extract_strided_slice %6 {offsets = [0, 48], sizes = [16, 16], strides = [1, 1]} : vector<16x64xf32> to vector<16x16xf32>
    %240 = vector.extract_strided_slice %11 {offsets = [0, 48], sizes = [16, 16], strides = [1, 1]} : vector<16x64xf32> to vector<16x16xf32>
    %241 = vector.extract_strided_slice %16 {offsets = [0, 48], sizes = [16, 16], strides = [1, 1]} : vector<16x64xf32> to vector<16x16xf32>
    %cst_59 = arith.constant dense<0.000000e+00> : vector<16x16xf32>
    %242 = tpu.matmul %239, %240, %cst_59 {dimension_numbers = #tpu.dot_dimension_numbers<[1], [1], [0], [0], [0, 0, 1, 0], [], []>} : vector<16x16xf32>, vector<16x16xf32>, vector<16x16xf32> -> vector<16x16xf32>
    %cst_60 = arith.constant 2.500000e-01 : f32
    %243 = vector.broadcast %cst_60 : f32 to vector<16x16xf32>
    %244 = arith.mulf %242, %243 : vector<16x16xf32>
    %245 = vector.extract_strided_slice %244 {offsets = [1, 0], sizes = [15, 16], strides = [1, 1]} : vector<16x16xf32> to vector<15x16xf32>
    %246 = tpu.concatenate %245, %18 in 0 : vector<15x16xf32>, vector<1x16xf32> -> vector<16x16xf32>
    %247 = vector.extract_strided_slice %244 {offsets = [0, 0], sizes = [15, 16], strides = [1, 1]} : vector<16x16xf32> to vector<15x16xf32>
    %248 = tpu.concatenate %18, %247 in 0 : vector<1x16xf32>, vector<15x16xf32> -> vector<16x16xf32>
    %cst_61 = arith.constant 0.000000e+00 : f32
    %249 = vector.broadcast %cst_61 : f32 to vector<16x16xf32>
    %250 = vector.extract_strided_slice %248 {offsets = [0, 13], sizes = [16, 3], strides = [1, 1]} : vector<16x16xf32> to vector<16x3xf32>
    %251 = vector.extract_strided_slice %244 {offsets = [0, 0], sizes = [16, 13], strides = [1, 1]} : vector<16x16xf32> to vector<16x13xf32>
    %252 = tpu.concatenate %250, %251 in 1 : vector<16x3xf32>, vector<16x13xf32> -> vector<16x16xf32>
    %c0_62 = arith.constant 0 : index
    %253 = memref.load %arg10[%c0_62] : memref<7xf32, #tpu.memory_space<smem>>
    %254 = vector.broadcast %253 : f32 to vector<16x16xf32>
    %255 = arith.mulf %254, %252 : vector<16x16xf32>
    %256 = arith.addf %249, %255 : vector<16x16xf32>
    %257 = vector.extract_strided_slice %248 {offsets = [0, 14], sizes = [16, 2], strides = [1, 1]} : vector<16x16xf32> to vector<16x2xf32>
    %258 = vector.extract_strided_slice %244 {offsets = [0, 0], sizes = [16, 14], strides = [1, 1]} : vector<16x16xf32> to vector<16x14xf32>
    %259 = tpu.concatenate %257, %258 in 1 : vector<16x2xf32>, vector<16x14xf32> -> vector<16x16xf32>
    %c1_63 = arith.constant 1 : index
    %260 = memref.load %arg10[%c1_63] : memref<7xf32, #tpu.memory_space<smem>>
    %261 = vector.broadcast %260 : f32 to vector<16x16xf32>
    %262 = arith.mulf %261, %259 : vector<16x16xf32>
    %263 = arith.addf %256, %262 : vector<16x16xf32>
    %264 = vector.extract_strided_slice %248 {offsets = [0, 15], sizes = [16, 1], strides = [1, 1]} : vector<16x16xf32> to vector<16x1xf32>
    %265 = vector.extract_strided_slice %244 {offsets = [0, 0], sizes = [16, 15], strides = [1, 1]} : vector<16x16xf32> to vector<16x15xf32>
    %266 = tpu.concatenate %264, %265 in 1 : vector<16x1xf32>, vector<16x15xf32> -> vector<16x16xf32>
    %c2_64 = arith.constant 2 : index
    %267 = memref.load %arg10[%c2_64] : memref<7xf32, #tpu.memory_space<smem>>
    %268 = vector.broadcast %267 : f32 to vector<16x16xf32>
    %269 = arith.mulf %268, %266 : vector<16x16xf32>
    %270 = arith.addf %263, %269 : vector<16x16xf32>
    %c3_65 = arith.constant 3 : index
    %271 = memref.load %arg10[%c3_65] : memref<7xf32, #tpu.memory_space<smem>>
    %272 = vector.broadcast %271 : f32 to vector<16x16xf32>
    %273 = arith.mulf %272, %244 : vector<16x16xf32>
    %274 = arith.addf %270, %273 : vector<16x16xf32>
    %275 = vector.extract_strided_slice %244 {offsets = [0, 1], sizes = [16, 15], strides = [1, 1]} : vector<16x16xf32> to vector<16x15xf32>
    %276 = vector.extract_strided_slice %246 {offsets = [0, 0], sizes = [16, 1], strides = [1, 1]} : vector<16x16xf32> to vector<16x1xf32>
    %277 = tpu.concatenate %275, %276 in 1 : vector<16x15xf32>, vector<16x1xf32> -> vector<16x16xf32>
    %c4_66 = arith.constant 4 : index
    %278 = memref.load %arg10[%c4_66] : memref<7xf32, #tpu.memory_space<smem>>
    %279 = vector.broadcast %278 : f32 to vector<16x16xf32>
    %280 = arith.mulf %279, %277 : vector<16x16xf32>
    %281 = arith.addf %274, %280 : vector<16x16xf32>
    %282 = vector.extract_strided_slice %244 {offsets = [0, 2], sizes = [16, 14], strides = [1, 1]} : vector<16x16xf32> to vector<16x14xf32>
    %283 = vector.extract_strided_slice %246 {offsets = [0, 0], sizes = [16, 2], strides = [1, 1]} : vector<16x16xf32> to vector<16x2xf32>
    %284 = tpu.concatenate %282, %283 in 1 : vector<16x14xf32>, vector<16x2xf32> -> vector<16x16xf32>
    %c5_67 = arith.constant 5 : index
    %285 = memref.load %arg10[%c5_67] : memref<7xf32, #tpu.memory_space<smem>>
    %286 = vector.broadcast %285 : f32 to vector<16x16xf32>
    %287 = arith.mulf %286, %284 : vector<16x16xf32>
    %288 = arith.addf %281, %287 : vector<16x16xf32>
    %289 = vector.extract_strided_slice %244 {offsets = [0, 3], sizes = [16, 13], strides = [1, 1]} : vector<16x16xf32> to vector<16x13xf32>
    %290 = vector.extract_strided_slice %246 {offsets = [0, 0], sizes = [16, 3], strides = [1, 1]} : vector<16x16xf32> to vector<16x3xf32>
    %291 = tpu.concatenate %289, %290 in 1 : vector<16x13xf32>, vector<16x3xf32> -> vector<16x16xf32>
    %c6_68 = arith.constant 6 : index
    %292 = memref.load %arg10[%c6_68] : memref<7xf32, #tpu.memory_space<smem>>
    %293 = vector.broadcast %292 : f32 to vector<16x16xf32>
    %294 = arith.mulf %293, %291 : vector<16x16xf32>
    %295 = arith.addf %288, %294 : vector<16x16xf32>
    %296 = vector.broadcast %17 : f32 to vector<16x16xf32>
    %297 = arith.addf %295, %296 : vector<16x16xf32>
    %298 = arith.addf %244, %297 : vector<16x16xf32>
    %cst_69 = arith.constant dense<0xFF800000> : vector<16xf32>
    %299 = vector.multi_reduction <maximumf>, %298, %cst_69 [1] : vector<16x16xf32> to vector<16xf32>
    %300 = vector.shape_cast %299 : vector<16xf32> to vector<16x1xf32>
    %301 = vector.broadcast %300 : vector<16x1xf32> to vector<16x16xf32>
    %302 = arith.subf %298, %301 : vector<16x16xf32>
    %303 = math.exp %302 : vector<16x16xf32>
    %cst_70 = arith.constant dense<0.000000e+00> : vector<16xf32>
    %304 = vector.multi_reduction <add>, %303, %cst_70 [1] : vector<16x16xf32> to vector<16xf32>
    %305 = vector.shape_cast %304 : vector<16xf32> to vector<16x1xf32>
    %306 = vector.broadcast %305 : vector<16x1xf32> to vector<16x16xf32>
    %307 = arith.divf %303, %306 : vector<16x16xf32>
    %cst_71 = arith.constant dense<0.000000e+00> : vector<16x16xf32>
    %308 = tpu.matmul %307, %241, %cst_71 {dimension_numbers = #tpu.dot_dimension_numbers<[1], [0], [0], [1], [0, 0, 1, 1], [], []>} : vector<16x16xf32>, vector<16x16xf32>, vector<16x16xf32> -> vector<16x16xf32>
    %c48 = arith.constant 48 : index
    %c0_72 = arith.constant 0 : index
    %309 = vector.load %arg5[%c48, %c0_72] : memref<64x64xf32, #tpu.memory_space<vmem>>, vector<16x64xf32>
    %cst_73 = arith.constant dense<0.000000e+00> : vector<16x64xf32>
    %310 = tpu.matmul %308, %309, %cst_73 {dimension_numbers = #tpu.dot_dimension_numbers<[1], [0], [0], [1], [0, 0, 1, 1], [], []>} : vector<16x16xf32>, vector<16x64xf32>, vector<16x64xf32> -> vector<16x64xf32>
    %311 = arith.addf %238, %310 : vector<16x64xf32>
    %c0_74 = arith.constant 0 : index
    %c0_75 = arith.constant 0 : index
    %312 = vector.load %arg9[%c0_74, %c0_75] : memref<1x64xf32, #tpu.memory_space<vmem>>, vector<1x64xf32>
    %313 = vector.broadcast %312 : vector<1x64xf32> to vector<16x64xf32>
    %314 = arith.addf %311, %313 : vector<16x64xf32>
    %c0_76 = arith.constant 0 : index
    %c0_77 = arith.constant 0 : index
    %c0_78 = arith.constant 0 : index
    %315 = vector.load %arg12[%c0_76, %c0_77, %c0_78] : memref<1x16x64xf32, #tpu.memory_space<vmem>>, vector<1x16x64xf32>
    %316 = vector.shape_cast %315 : vector<1x16x64xf32> to vector<16x64xf32>
    %317 = vector.shape_cast %314 : vector<16x64xf32> to vector<1x16x64xf32>
    tpu.vector_store %arg12[%c0_76, %c0_77, %c0_78], %317 {strides = array<i32>} : memref<1x16x64xf32, #tpu.memory_space<vmem>>, vector<1x16x64xf32>,
    return
  }
  func.func @transform_0(%arg0: i32) -> (i32, i32, i32) {
    %c0_i32 = arith.constant 0 : i32
    %c0_i32_0 = arith.constant 0 : i32
    %c0_i32_1 = arith.constant 0 : i32
    return %arg0, %c0_i32, %c0_i32_0 : i32, i32, i32
  }
  func.func @transform_1(%arg0: i32) -> (i32, i32) {
    %c0_i32 = arith.constant 0 : i32
    %c0_i32_0 = arith.constant 0 : i32
    %c0_i32_1 = arith.constant 0 : i32
    return %c0_i32, %c0_i32_0 : i32, i32
  }
  func.func @transform_2(%arg0: i32) -> (i32, i32) {
    %c0_i32 = arith.constant 0 : i32
    %c0_i32_0 = arith.constant 0 : i32
    %c0_i32_1 = arith.constant 0 : i32
    return %c0_i32, %c0_i32_0 : i32, i32
  }
  func.func @transform_3(%arg0: i32) -> (i32, i32) {
    %c0_i32 = arith.constant 0 : i32
    %c0_i32_0 = arith.constant 0 : i32
    %c0_i32_1 = arith.constant 0 : i32
    return %c0_i32, %c0_i32_0 : i32, i32
  }
  func.func @transform_4(%arg0: i32) -> (i32, i32) {
    %c0_i32 = arith.constant 0 : i32
    %c0_i32_0 = arith.constant 0 : i32
    %c0_i32_1 = arith.constant 0 : i32
    return %c0_i32, %c0_i32_0 : i32, i32
  }
  func.func @transform_5(%arg0: i32) -> (i32, i32) {
    %c0_i32 = arith.constant 0 : i32
    %c0_i32_0 = arith.constant 0 : i32
    %c0_i32_1 = arith.constant 0 : i32
    return %c0_i32, %c0_i32_0 : i32, i32
  }
  func.func @transform_6(%arg0: i32) -> (i32, i32) {
    %c0_i32 = arith.constant 0 : i32
    %c0_i32_0 = arith.constant 0 : i32
    %c0_i32_1 = arith.constant 0 : i32
    return %c0_i32, %c0_i32_0 : i32, i32
  }
  func.func @transform_7(%arg0: i32) -> (i32, i32) {
    %c0_i32 = arith.constant 0 : i32
    %c0_i32_0 = arith.constant 0 : i32
    %c0_i32_1 = arith.constant 0 : i32
    return %c0_i32, %c0_i32_0 : i32, i32
  }
  func.func @transform_8(%arg0: i32) -> (i32, i32) {
    %c0_i32 = arith.constant 0 : i32
    %c0_i32_0 = arith.constant 0 : i32
    %c0_i32_1 = arith.constant 0 : i32
    return %c0_i32, %c0_i32_0 : i32, i32
  }
  func.func @transform_9(%arg0: i32) -> i32 {
    %c0_i32 = arith.constant 0 : i32
    %c0_i32_0 = arith.constant 0 : i32
    return %c0_i32 : i32
  }
  func.func @transform_10(%arg0: i32) -> i32 {
    %c0_i32 = arith.constant 0 : i32
    %c0_i32_0 = arith.constant 0 : i32
    return %c0_i32 : i32
  }
  func.func @transform_11(%arg0: i32) -> (i32, i32, i32) {
    %c0_i32 = arith.constant 0 : i32
    %c0_i32_0 = arith.constant 0 : i32
    %c0_i32_1 = arith.constant 0 : i32
    return %arg0, %c0_i32, %c0_i32_0 : i32, i32, i32
  }
}

</mosaic_0001>

<llo_original>
// kernel: tpu_custom_call.1
$region0: #{tpu_custom_call.1}
  #allocation0 [shape = 'u32[]', space=smem, size = 0x4, offset = 0x4, fixed_abs, tag = 'smem constant byte address 0x4 - core index']
  #allocation1 [shape = 'u32[144,128]{1,0:T(1,128)}', space=vmem, size = 0x12000, scoped, tag = 'internal scratch']
  #allocation2 [shape = 'f32[1]{0:T(128)S(6)}', space=smem, size = 0x200, scoped, tag = 'scoped memory for tpu_custom_call.1']
  %s0 = inlined_call_operand.hbm [shape: f32[2,16,64], index: 0, kind: input, shape index: {}]
  %s1 = inlined_call_operand.hbm [shape: f32[64,64], index: 1, kind: input, shape index: {}]
  %s2 = inlined_call_operand.hbm [shape: f32[64,64], index: 2, kind: input, shape index: {}]
  %s3 = inlined_call_operand.hbm [shape: f32[64,64], index: 3, kind: input, shape index: {}]
  %s4 = inlined_call_operand.hbm [shape: f32[64,64], index: 4, kind: input, shape index: {}]
  %s5 = inlined_call_operand.vmem [shape: f32[1,64], index: 5, kind: input, shape index: {}]
  %s6 = inlined_call_operand.vmem [shape: f32[1,64], index: 6, kind: input, shape index: {}]
  %s7 = inlined_call_operand.vmem [shape: f32[1,64], index: 7, kind: input, shape index: {}]
  %s8 = inlined_call_operand.vmem [shape: f32[1,64], index: 8, kind: input, shape index: {}]
  %s9 = inlined_call_operand.vmem [shape: f32[7], index: 9, kind: input, shape index: {}]
  %s10 = inlined_call_operand.<no memory space> [shape: f32[1], index: 10, kind: input, shape index: {}]
  %s11 = inlined_call_operand.hbm [shape: f32[2,16,64], index: 11, kind: output, shape index: {}]
  %s12 = sld [smem:[#allocation0]]
  $region101: #{tpu_custom_call.1} parent=0
    _
  %s14 = ssub.s32 1, %s12
  %s15 = scalar_select 0, %s14, %s12
  %16 = sst [smem:[#allocation2]] %s10
  $region1: #{tpu_custom_call.1} parent=0
    #allocation3 [shape = 'u8[16384]{0}', space=vmem, size = 0x4000, scoped, tag = 'input window, operand 0']
    #allocation4 [shape = 's32[2]{0}', space=sflag, size = 0x8, scoped, tag = 'scoped memory for tpu_custom_call.1']
    #allocation5 [shape = 's32[2]{0}', space=sflag, size = 0x8, scoped, tag = 'scoped memory for tpu_custom_call.1']
    #allocation6 [shape = 's32[2]{0}', space=sflag, size = 0x8, scoped, tag = 'scoped memory for tpu_custom_call.1']
    #allocation7 [shape = 'u8[32768]{0}', space=vmem, size = 0x8000, scoped, tag = 'input window, operand 1, single buffered']
    #allocation8 [shape = 's32[1]{0}', space=sflag, size = 0x4, scoped, tag = 'scoped memory for tpu_custom_call.1']
    #allocation9 [shape = 'u8[32768]{0}', space=vmem, size = 0x8000, scoped, tag = 'input window, operand 2, single buffered']
    #allocation10 [shape = 'u8[32768]{0}', space=vmem, size = 0x8000, scoped, tag = 'input window, operand 3, single buffered']
    #allocation11 [shape = 's32[1]{0}', space=sflag, size = 0x4, scoped, tag = 'scoped memory for tpu_custom_call.1']
    #allocation12 [shape = 'u8[32768]{0}', space=vmem, size = 0x8000, scoped, tag = 'input window, operand 4, single buffered']
    #allocation13 [shape = 'u8[512]{0}', space=smem, size = 0x200, scoped, tag = 'input window, operand 9, single buffered']
    #allocation14 [shape = 'u8[16384]{0}', space=vmem, size = 0x4000, scoped, tag = 'output window, operand 0']
    %17 = vsyncpa [#allocation4], 0
    %s18 = scalar_lea.sflag [#allocation4], 1
    %19 = vsyncpa %s18, 0
    %20 = vsyncpa [#allocation8], 0
    %21 = vsyncpa [#allocation11], 0
    %22 = vsyncpa [#allocation6], 0
    %23 = vsyncpa [#allocation5], 0
    %s24 = scalar_lea.sflag [#allocation5], 1
    %25 = vsyncpa %s24, 0
    loop: start=0, step=1, limit=4
    $region2: #{tpu_custom_call.1} parent=1 // loop_pre_header
      _
    $region3: #{tpu_custom_call.1} parent=1 // loop_header
      %s27 = sphi 0, %s31
      %p28 = scmp.ge.s32.totalorder %s27, 4
      %s37 = sphi 0, %s39
      %s40 = sphi 0, %s37
      %s41 = sphi 0, %s40
      %s57 = sphi 0, %s41
      %s61 = sphi 0, %s61
      %s63 = sphi 0, %s61
      %s64 = sphi 0, %s63
      %s78 = sphi 0, %s64
      %s82 = sphi 0, %s82
      %s84 = sphi 0, %s82
      %s85 = sphi 0, %s84
      %s99 = sphi 0, %s85
      %s103 = sphi 0, %s103
      %s105 = sphi 0, %s103
      %s106 = sphi 0, %s105
      %s120 = sphi 0, %s106
      %s124 = sphi 0, %s124
      %s126 = sphi 0, %s124
      %s127 = sphi 0, %s126
      %s141 = sphi 0, %s127
      %s145 = sphi 0, %s145
      %s147 = sphi 0, %s145
      %s148 = sphi 0, %s147
      %s162 = sphi 0, %s148
      %s166 = sphi 0, %s166
      %s168 = sphi 0, %s166
      %s169 = sphi 0, %s168
      %s183 = sphi 0, %s169
      %s187 = sphi 0, %s187
      %s189 = sphi 0, %s187
      %s190 = sphi 0, %s189
      %s204 = sphi 0, %s190
      %s208 = sphi 0, %s208
      %s210 = sphi 0, %s208
      %s211 = sphi 0, %s210
      %s225 = sphi 0, %s211
      %s229 = sphi 0, %s229
      %s231 = sphi 0, %s229
      %s232 = sphi 0, %s231
      %s246 = sphi 0, %s232
      %s250 = sphi 0, %s250
      %s252 = sphi 0, %s250
      %s253 = sphi 0, %s252
      %s267 = sphi 0, %s253
      %s273 = sphi 0, %s275
      %s276 = sphi 0, %s273
      %s277 = sphi 0, %s276
      %s293 = sphi 0, %s277
    $region4: #{tpu_custom_call.1} parent=1 // loop_header_branch
      %30 = sbr.rel (%p28) target = $region8
    $region5: #{tpu_custom_call.1} parent=1 // loop_body
      %s32 = ssub.s32 %s27, 1
      %s33 = ssub.s32 %s27, 2
      %s34 = sadd.s32 %s27, 1
      %s35 = ssub.s32 %s27, %s34
      %p36 = scmp.eq.s32.totalorder %s35, 0
      %s38 = sadd.s32 %s37, 1
      %s39 = scalar_select %p36, %s37, %s38
      %p42 = pneg %p36
      %p43 = scmp.eq.s32.totalorder %s27, 1
      %p44 = por %p42, %p43
      %p45 = scmp.ne.s32.totalorder %s37, %s40
      %p46 = scmp.eq.s32.totalorder %s27, 0
      %p47 = por %p45, %p46
      %p48 = scmp.ne.s32.totalorder %s37, %s40
      %p49 = scmp.eq.s32.totalorder %s32, 1
      %p50 = por %p48, %p49
      %p51 = scmp.ne.s32.totalorder %s40, %s41
      %p52 = scmp.eq.s32.totalorder %s32, 0
      %p53 = por %p51, %p52
      %p54 = scmp.ne.s32.totalorder %s40, %s41
      %p55 = scmp.eq.s32.totalorder %s33, 1
      %p56 = por %p54, %p55
      %p58 = scmp.ne.s32.totalorder %s41, %s57
      %p59 = scmp.eq.s32.totalorder %s33, 0
      %p60 = por %p58, %p59
      %s62 = sadd.s32 %s61, 1
      %p65 = scmp.eq.s32.totalorder %s27, 1
      %p66 = scmp.ne.s32.totalorder %s61, %s63
      %p67 = scmp.eq.s32.totalorder %s27, 0
      %p68 = por %p66, %p67
      %p69 = scmp.ne.s32.totalorder %s61, %s63
      %p70 = scmp.eq.s32.totalorder %s32, 1
      %p71 = por %p69, %p70
      %p72 = scmp.ne.s32.totalorder %s63, %s64
      %p73 = scmp.eq.s32.totalorder %s32, 0
      %p74 = por %p72, %p73
      %p75 = scmp.ne.s32.totalorder %s63, %s64
      %p76 = scmp.eq.s32.totalorder %s33, 1
      %p77 = por %p75, %p76
      %p79 = scmp.ne.s32.totalorder %s64, %s78
      %p80 = scmp.eq.s32.totalorder %s33, 0
      %p81 = por %p79, %p80
      %s83 = sadd.s32 %s82, 1
      %p86 = scmp.eq.s32.totalorder %s27, 1
      %p87 = scmp.ne.s32.totalorder %s82, %s84
      %p88 = scmp.eq.s32.totalorder %s27, 0
      %p89 = por %p87, %p88
      %p90 = scmp.ne.s32.totalorder %s82, %s84
      %p91 = scmp.eq.s32.totalorder %s32, 1
      %p92 = por %p90, %p91
      %p93 = scmp.ne.s32.totalorder %s84, %s85
      %p94 = scmp.eq.s32.totalorder %s32, 0
      %p95 = por %p93, %p94
      %p96 = scmp.ne.s32.totalorder %s84, %s85
      %p97 = scmp.eq.s32.totalorder %s33, 1
      %p98 = por %p96, %p97
      %p100 = scmp.ne.s32.totalorder %s85, %s99
      %p101 = scmp.eq.s32.totalorder %s33, 0
      %p102 = por %p100, %p101
      %s104 = sadd.s32 %s103, 1
      %p107 = scmp.eq.s32.totalorder %s27, 1
      %p108 = scmp.ne.s32.totalorder %s103, %s105
      %p109 = scmp.eq.s32.totalorder %s27, 0
      %p110 = por %p108, %p109
      %p111 = scmp.ne.s32.totalorder %s103, %s105
      %p112 = scmp.eq.s32.totalorder %s32, 1
      %p113 = por %p111, %p112
      %p114 = scmp.ne.s32.totalorder %s105, %s106
      %p115 = scmp.eq.s32.totalorder %s32, 0
      %p116 = por %p114, %p115
      %p117 = scmp.ne.s32.totalorder %s105, %s106
      %p118 = scmp.eq.s32.totalorder %s33, 1
      %p119 = por %p117, %p118
      %p121 = scmp.ne.s32.totalorder %s106, %s120
      %p122 = scmp.eq.s32.totalorder %s33, 0
      %p123 = por %p121, %p122
      %s125 = sadd.s32 %s124, 1
      %p128 = scmp.eq.s32.totalorder %s27, 1
      %p129 = scmp.ne.s32.totalorder %s124, %s126
      %p130 = scmp.eq.s32.totalorder %s27, 0
      %p131 = por %p129, %p130
      %p132 = scmp.ne.s32.totalorder %s124, %s126
      %p133 = scmp.eq.s32.totalorder %s32, 1
      %p134 = por %p132, %p133
      %p135 = scmp.ne.s32.totalorder %s126, %s127
      %p136 = scmp.eq.s32.totalorder %s32, 0
      %p137 = por %p135, %p136
      %p138 = scmp.ne.s32.totalorder %s126, %s127
      %p139 = scmp.eq.s32.totalorder %s33, 1
      %p140 = por %p138, %p139
      %p142 = scmp.ne.s32.totalorder %s127, %s141
      %p143 = scmp.eq.s32.totalorder %s33, 0
      %p144 = por %p142, %p143
      %s146 = sadd.s32 %s145, 1
      %p149 = scmp.eq.s32.totalorder %s27, 1
      %p150 = scmp.ne.s32.totalorder %s145, %s147
      %p151 = scmp.eq.s32.totalorder %s27, 0
      %p152 = por %p150, %p151
      %p153 = scmp.ne.s32.totalorder %s145, %s147
      %p154 = scmp.eq.s32.totalorder %s32, 1
      %p155 = por %p153, %p154
      %p156 = scmp.ne.s32.totalorder %s147, %s148
      %p157 = scmp.eq.s32.totalorder %s32, 0
      %p158 = por %p156, %p157
      %p159 = scmp.ne.s32.totalorder %s147, %s148
      %p160 = scmp.eq.s32.totalorder %s33, 1
      %p161 = por %p159, %p160
      %p163 = scmp.ne.s32.totalorder %s148, %s162
      %p164 = scmp.eq.s32.totalorder %s33, 0
      %p165 = por %p163, %p164
      %s167 = sadd.s32 %s166, 1
      %p170 = scmp.eq.s32.totalorder %s27, 1
      %p171 = scmp.ne.s32.totalorder %s166, %s168
      %p172 = scmp.eq.s32.totalorder %s27, 0
      %p173 = por %p171, %p172
      %p174 = scmp.ne.s32.totalorder %s166, %s168
      %p175 = scmp.eq.s32.totalorder %s32, 1
      %p176 = por %p174, %p175
      %p177 = scmp.ne.s32.totalorder %s168, %s169
      %p178 = scmp.eq.s32.totalorder %s32, 0
      %p179 = por %p177, %p178
      %p180 = scmp.ne.s32.totalorder %s168, %s169
      %p181 = scmp.eq.s32.totalorder %s33, 1
      %p182 = por %p180, %p181
      %p184 = scmp.ne.s32.totalorder %s169, %s183
      %p185 = scmp.eq.s32.totalorder %s33, 0
      %p186 = por %p184, %p185
      %s188 = sadd.s32 %s187, 1
      %p191 = scmp.eq.s32.totalorder %s27, 1
      %p192 = scmp.ne.s32.totalorder %s187, %s189
      %p193 = scmp.eq.s32.totalorder %s27, 0
      %p194 = por %p192, %p193
      %p195 = scmp.ne.s32.totalorder %s187, %s189
      %p196 = scmp.eq.s32.totalorder %s32, 1
      %p197 = por %p195, %p196
      %p198 = scmp.ne.s32.totalorder %s189, %s190
      %p199 = scmp.eq.s32.totalorder %s32, 0
      %p200 = por %p198, %p199
      %p201 = scmp.ne.s32.totalorder %s189, %s190
      %p202 = scmp.eq.s32.totalorder %s33, 1
      %p203 = por %p201, %p202
      %p205 = scmp.ne.s32.totalorder %s190, %s204
      %p206 = scmp.eq.s32.totalorder %s33, 0
      %p207 = por %p205, %p206
      %s209 = sadd.s32 %s208, 1
      %p212 = scmp.eq.s32.totalorder %s27, 1
      %p213 = scmp.ne.s32.totalorder %s208, %s210
      %p214 = scmp.eq.s32.totalorder %s27, 0
      %p215 = por %p213, %p214
      %p216 = scmp.ne.s32.totalorder %s208, %s210
      %p217 = scmp.eq.s32.totalorder %s32, 1
      %p218 = por %p216, %p217
      %p219 = scmp.ne.s32.totalorder %s210, %s211
      %p220 = scmp.eq.s32.totalorder %s32, 0
      %p221 = por %p219, %p220
      %p222 = scmp.ne.s32.totalorder %s210, %s211
      %p223 = scmp.eq.s32.totalorder %s33, 1
      %p224 = por %p222, %p223
      %p226 = scmp.ne.s32.totalorder %s211, %s225
      %p227 = scmp.eq.s32.totalorder %s33, 0
      %p228 = por %p226, %p227
      %s230 = sadd.s32 %s229, 1
      %p233 = scmp.eq.s32.totalorder %s27, 1
      %p234 = scmp.ne.s32.totalorder %s229, %s231
      %p235 = scmp.eq.s32.totalorder %s27, 0
      %p236 = por %p234, %p235
      %p237 = scmp.ne.s32.totalorder %s229, %s231
      %p238 = scmp.eq.s32.totalorder %s32, 1
      %p239 = por %p237, %p238
      %p240 = scmp.ne.s32.totalorder %s231, %s232
      %p241 = scmp.eq.s32.totalorder %s32, 0
      %p242 = por %p240, %p241
      %p243 = scmp.ne.s32.totalorder %s231, %s232
      %p244 = scmp.eq.s32.totalorder %s33, 1
      %p245 = por %p243, %p244
      %p247 = scmp.ne.s32.totalorder %s232, %s246
      %p248 = scmp.eq.s32.totalorder %s33, 0
      %p249 = por %p247, %p248
      %s251 = sadd.s32 %s250, 1
      %p254 = scmp.eq.s32.totalorder %s27, 1
      %p255 = scmp.ne.s32.totalorder %s250, %s252
      %p256 = scmp.eq.s32.totalorder %s27, 0
      %p257 = por %p255, %p256
      %p258 = scmp.ne.s32.totalorder %s250, %s252
      %p259 = scmp.eq.s32.totalorder %s32, 1
      %p260 = por %p258, %p259
      %p261 = scmp.ne.s32.totalorder %s252, %s253
      %p262 = scmp.eq.s32.totalorder %s32, 0
      %p263 = por %p261, %p262
      %p264 = scmp.ne.s32.totalorder %s252, %s253
      %p265 = scmp.eq.s32.totalorder %s33, 1
      %p266 = por %p264, %p265
      %p268 = scmp.ne.s32.totalorder %s253, %s267
      %p269 = scmp.eq.s32.totalorder %s33, 0
      %p270 = por %p268, %p269
      %s271 = ssub.s32 %s27, %s34
      %p272 = scmp.eq.s32.totalorder %s271, 0
      %s274 = sadd.s32 %s273, 1
      %s275 = scalar_select %p272, %s273, %s274
      %p278 = pneg %p272
      %p279 = scmp.eq.s32.totalorder %s27, 1
      %p280 = por %p278, %p279
      %p281 = scmp.ne.s32.totalorder %s273, %s276
      %p282 = scmp.eq.s32.totalorder %s27, 0
      %p283 = por %p281, %p282
      %p284 = scmp.ne.s32.totalorder %s273, %s276
      %p285 = scmp.eq.s32.totalorder %s32, 1
      %p286 = por %p284, %p285
      %p287 = scmp.ne.s32.totalorder %s276, %s277
      %p288 = scmp.eq.s32.totalorder %s32, 0
      %p289 = por %p287, %p288
      %p290 = scmp.ne.s32.totalorder %s276, %s277
      %p291 = scmp.eq.s32.totalorder %s33, 1
      %p292 = por %p290, %p291
      %p294 = scmp.ne.s32.totalorder %s277, %s293
      %p295 = scmp.eq.s32.totalorder %s33, 0
      %p296 = por %p294, %p295
      %p297 = scmp.le.s32.totalorder 1, %s27
      %p298 = scmp.lt.s32.totalorder %s27, 3
      %p299 = pnand %p297, %p298
      %p300 = pneg %p299
      // Predicated region
      $region9: #{tpu_custom_call.1} parent=5 // pred_check
        _
      $region10: #{tpu_custom_call.1} parent=5 // pred_check_branch
        %302 = sbr.rel (%p299) target = $region12
      $region11: #{tpu_custom_call.1} parent=5 // pred_region
        %s303 = ssub.s32 %s27, 1
        // Predicated region
        $region13: #{tpu_custom_call.1} parent=11 // pred_check
          %p304 = pneg %p74
        $region14: #{tpu_custom_call.1} parent=11 // pred_check_branch
          %306 = sbr.rel (%p304) target = $region16
        $region15: #{tpu_custom_call.1} parent=11 // pred_region
          %s308 = ssub.s32 1024, 1024
          %309 = vsyncadd [#allocation8], %s308
          %s310 = sshll.u32 [#allocation7], 4
          %s311 = int_to_ptr.vmem [resolvable:$true] %s310
          %316 = dma.hbm_to_vmem [thread:$0]  %s1, 1024, %s311, [#allocation8], 128, 128, 8
        $region16: #{tpu_custom_call.1} parent=11 // pred_fallthru
          _
        // Predicated region
        $region17: #{tpu_custom_call.1} parent=11 // pred_check
          %p317 = pneg %p95
        $region18: #{tpu_custom_call.1} parent=11 // pred_check_branch
          %319 = sbr.rel (%p317) target = $region20
        $region19: #{tpu_custom_call.1} parent=11 // pred_region
          %s321 = ssub.s32 1024, 1024
          %322 = vsyncadd [#allocation8], %s321
          %s323 = sshll.u32 [#allocation9], 4
          %s324 = int_to_ptr.vmem [resolvable:$true] %s323
          %329 = dma.hbm_to_vmem [thread:$0]  %s2, 1024, %s324, [#allocation8], 128, 128, 8
        $region20: #{tpu_custom_call.1} parent=11 // pred_fallthru
          _
        // Predicated region
        $region21: #{tpu_custom_call.1} parent=11 // pred_check
          %p330 = pneg %p116
        $region22: #{tpu_custom_call.1} parent=11 // pred_check_branch
          %332 = sbr.rel (%p330) target = $region24
        $region23: #{tpu_custom_call.1} parent=11 // pred_region
          %s334 = ssub.s32 1024, 1024
          %335 = vsyncadd [#allocation11], %s334
          %s336 = sshll.u32 [#allocation10], 4
          %s337 = int_to_ptr.vmem [resolvable:$true] %s336
          %342 = dma.hbm_to_vmem [thread:$0]  %s3, 1024, %s337, [#allocation11], 128, 128, 8
        $region24: #{tpu_custom_call.1} parent=11 // pred_fallthru
          _
        // Predicated region
        $region25: #{tpu_custom_call.1} parent=11 // pred_check
          %p343 = pneg %p137
        $region26: #{tpu_custom_call.1} parent=11 // pred_check_branch
          %345 = sbr.rel (%p343) target = $region28
        $region27: #{tpu_custom_call.1} parent=11 // pred_region
          %s347 = ssub.s32 1024, 1024
          %348 = vsyncadd [#allocation11], %s347
          %s349 = sshll.u32 [#allocation12], 4
          %s350 = int_to_ptr.vmem [resolvable:$true] %s349
          %355 = dma.hbm_to_vmem [thread:$0]  %s4, 1024, %s350, [#allocation11], 128, 128, 8
        $region28: #{tpu_custom_call.1} parent=11 // pred_fallthru
          _
        // Predicated region
        $region29: #{tpu_custom_call.1} parent=11 // pred_check
          %p356 = pneg %p158
        $region30: #{tpu_custom_call.1} parent=11 // pred_check_branch
          %358 = sbr.rel (%p356) target = $region32
        $region31: #{tpu_custom_call.1} parent=11 // pred_region
          _
        $region32: #{tpu_custom_call.1} parent=11 // pred_fallthru
          _
        // Predicated region
        $region33: #{tpu_custom_call.1} parent=11 // pred_check
          %p359 = pneg %p179
        $region34: #{tpu_custom_call.1} parent=11 // pred_check_branch
          %361 = sbr.rel (%p359) target = $region36
        $region35: #{tpu_custom_call.1} parent=11 // pred_region
          _
        $region36: #{tpu_custom_call.1} parent=11 // pred_fallthru
          _
        // Predicated region
        $region37: #{tpu_custom_call.1} parent=11 // pred_check
          %p362 = pneg %p200
        $region38: #{tpu_custom_call.1} parent=11 // pred_check_branch
          %364 = sbr.rel (%p362) target = $region40
        $region39: #{tpu_custom_call.1} parent=11 // pred_region
          _
        $region40: #{tpu_custom_call.1} parent=11 // pred_fallthru
          _
        // Predicated region
        $region41: #{tpu_custom_call.1} parent=11 // pred_check
          %p365 = pneg %p221
        $region42: #{tpu_custom_call.1} parent=11 // pred_check_branch
          %367 = sbr.rel (%p365) target = $region44
        $region43: #{tpu_custom_call.1} parent=11 // pred_region
          _
        $region44: #{tpu_custom_call.1} parent=11 // pred_fallthru
          _
        // Predicated region
        $region45: #{tpu_custom_call.1} parent=11 // pred_check
          %p368 = pneg %p242
        $region46: #{tpu_custom_call.1} parent=11 // pred_check_branch
          %370 = sbr.rel (%p368) target = $region48
        $region47: #{tpu_custom_call.1} parent=11 // pred_region
          %s372 = ssub.s32 16, 16
          %373 = vsyncadd [#allocation6], %s372
          %s375 = sshll.u32 %s9, 4
          %s376 = int_to_ptr.vmem [resolvable:$true] %s375
          %378 = dma.vmem_to_smem %s376, 16, [#allocation13], [#allocation6]
        $region48: #{tpu_custom_call.1} parent=11 // pred_fallthru
          _
        // Predicated region
        $region49: #{tpu_custom_call.1} parent=11 // pred_check
          %p379 = pneg %p263
        $region50: #{tpu_custom_call.1} parent=11 // pred_check_branch
          %381 = sbr.rel (%p379) target = $region52
        $region51: #{tpu_custom_call.1} parent=11 // pred_region
          _
        $region52: #{tpu_custom_call.1} parent=11 // pred_fallthru
          _
      $region12: #{tpu_custom_call.1} parent=5 // pred_fallthru
        _
      %p382 = scmp.lt.s32.totalorder %s27, 2
      // Predicated region
      $region53: #{tpu_custom_call.1} parent=5 // pred_check
        %p383 = pneg %p382
      $region54: #{tpu_custom_call.1} parent=5 // pred_check_branch
        %385 = sbr.rel (%p383) target = $region56
      $region55: #{tpu_custom_call.1} parent=5 // pred_region
        // Predicated region
        $region57: #{tpu_custom_call.1} parent=55 // pred_check
          %p386 = pneg %p47
        $region58: #{tpu_custom_call.1} parent=55 // pred_check_branch
          %388 = sbr.rel (%p386) target = $region60
        $region59: #{tpu_custom_call.1} parent=55 // pred_region
          %s389 = sand.u32 %s37, 1
          %s390 = scalar_lea.sflag [#allocation4], %s389
          %s391 = sand.u32 %s37, 1
          %s392 = smul.addr %s391, 16
          %s393 = scalar_lea.vmem [#allocation3], %s392
          %s395 = ssub.s32 256, 256
          %396 = vsyncadd %s390, %s395
          %s397 = smul.addr %s27, 2
          %s398 = smul.addr %s397, 128
          %s399 = scalar_lea.hbm %s0, %s398
          %s400 = sshll.u32 %s393, 4
          %s401 = int_to_ptr.vmem [resolvable:$true] %s400
          %406 = dma.hbm_to_vmem [thread:$0]  %s399, 256, %s401, %s390, 128, 128, 8
        $region60: #{tpu_custom_call.1} parent=55 // pred_fallthru
          _
      $region56: #{tpu_custom_call.1} parent=5 // pred_fallthru
        _
      %p407 = scmp.le.s32.totalorder 1, %s27
      %p408 = scmp.lt.s32.totalorder %s27, 3
      %p409 = pnand %p407, %p408
      %p410 = pneg %p409
      // Predicated region
      $region61: #{tpu_custom_call.1} parent=5 // pred_check
        _
      $region62: #{tpu_custom_call.1} parent=5 // pred_check_branch
        %412 = sbr.rel (%p409) target = $region64
      $region63: #{tpu_custom_call.1} parent=5 // pred_region
        %s413 = ssub.s32 %s27, 1
        %s414 = sand.u32 %s40, 1
        %s415 = scalar_lea.sflag [#allocation4], %s414
        %s416 = sand.u32 %s40, 1
        %s417 = smul.addr %s416, 16
        %s418 = scalar_lea.vmem [#allocation3], %s417
        // Predicated region
        $region65: #{tpu_custom_call.1} parent=63 // pred_check
          %p419 = pneg %p53
        $region66: #{tpu_custom_call.1} parent=63 // pred_check_branch
          %421 = sbr.rel (%p419) target = $region68
        $region67: #{tpu_custom_call.1} parent=63 // pred_region
          %422 = dma.done %s415, 256
        $region68: #{tpu_custom_call.1} parent=63 // pred_fallthru
          _
        // Predicated region
        $region69: #{tpu_custom_call.1} parent=63 // pred_check
          %p423 = pneg %p74
        $region70: #{tpu_custom_call.1} parent=63 // pred_check_branch
          %425 = sbr.rel (%p423) target = $region72
        $region71: #{tpu_custom_call.1} parent=63 // pred_region
          %426 = dma.done [#allocation8], 1024
        $region72: #{tpu_custom_call.1} parent=63 // pred_fallthru
          _
        // Predicated region
        $region73: #{tpu_custom_call.1} parent=63 // pred_check
          %p427 = pneg %p95
        $region74: #{tpu_custom_call.1} parent=63 // pred_check_branch
          %429 = sbr.rel (%p427) target = $region76
        $region75: #{tpu_custom_call.1} parent=63 // pred_region
          %430 = dma.done [#allocation8], 1024
        $region76: #{tpu_custom_call.1} parent=63 // pred_fallthru
          _
        // Predicated region
        $region77: #{tpu_custom_call.1} parent=63 // pred_check
          %p431 = pneg %p116
        $region78: #{tpu_custom_call.1} parent=63 // pred_check_branch
          %433 = sbr.rel (%p431) target = $region80
        $region79: #{tpu_custom_call.1} parent=63 // pred_region
          %434 = dma.done [#allocation11], 1024
        $region80: #{tpu_custom_call.1} parent=63 // pred_fallthru
          _
        // Predicated region
        $region81: #{tpu_custom_call.1} parent=63 // pred_check
          %p435 = pneg %p137
        $region82: #{tpu_custom_call.1} parent=63 // pred_check_branch
          %437 = sbr.rel (%p435) target = $region84
        $region83: #{tpu_custom_call.1} parent=63 // pred_region
          %438 = dma.done [#allocation11], 1024
        $region84: #{tpu_custom_call.1} parent=63 // pred_fallthru
          _
        // Predicated region
        $region85: #{tpu_custom_call.1} parent=63 // pred_check
          %p439 = pneg %p242
        $region86: #{tpu_custom_call.1} parent=63 // pred_check_branch
          %441 = sbr.rel (%p439) target = $region88
        $region87: #{tpu_custom_call.1} parent=63 // pred_region
          %442 = dma.done [#allocation6], 16
        $region88: #{tpu_custom_call.1} parent=63 // pred_fallthru
          _
        %443 = sfence
        %s444 = sand.u32 %s40, 1
        %s445 = scalar_lea.sflag [#allocation4], %s444
        %s446 = sand.u32 %s40, 1
        %s447 = smul.addr %s446, 16
        %s448 = scalar_lea.vmem [#allocation3], %s447
        %p449 = pneg %p53
        %p450 = pneg %p50
        %p451 = pneg %p74
        %p452 = pneg %p71
        %p453 = pneg %p95
        %p454 = pneg %p92
        %p455 = pneg %p116
        %p456 = pneg %p113
        %p457 = pneg %p137
        %p458 = pneg %p134
        %p459 = pneg %p158
        %p460 = pneg %p155
        %p461 = pneg %p179
        %p462 = pneg %p176
        %p463 = pneg %p200
        %p464 = pneg %p197
        %p465 = pneg %p221
        %p466 = pneg %p218
        %p467 = pneg %p242
        %p468 = pneg %p239
        %p469 = pneg %p263
        %p470 = pneg %p260
        %p471 = pneg %p289
        %p472 = pneg %p286
        %s473 = sand.u32 %s276, 1
        %s474 = scalar_lea.sflag [#allocation5], %s473
        %s475 = sand.u32 %s276, 1
        %s476 = smul.addr %s475, 16
        %s477 = scalar_lea.vmem [#allocation14], %s476
        %v478 = vld [vmem:[%s418] sm:$0xff]
        %v479 = vld [vmem:[%s418 + $0x8] sm:$0xff]
        %v480 = vld [vmem:[#allocation7] sm:$0xff]
        %v481 = vld [vmem:[#allocation7 + $0x8] sm:$0xff]
        %v482 = vld [vmem:[#allocation7 + $0x10] sm:$0xff]
        %v483 = vld [vmem:[#allocation7 + $0x18] sm:$0xff]
        %v484 = vld [vmem:[#allocation7 + $0x20] sm:$0xff]
        %v485 = vld [vmem:[#allocation7 + $0x28] sm:$0xff]
        %v486 = vld [vmem:[#allocation7 + $0x30] sm:$0xff]
        %v487 = vld [vmem:[#allocation7 + $0x38] sm:$0xff]
        %v488 = vld [vmem:[%s5] sm:$0x1]
        %v490 = vlaneseq
        %v491 = vshrl.u32 %v490, 7
        %v492 = vsub.s32 0, %v491
        %v493 = vrot.slane %v488, %v492
        %vm495 = vcmask 523264
        %v497 = vsel %vm495, %v478, 0
        %v500 = vsel %vm495, %v479, 0
        %502 = vmatprep.subr.mxu0 0.0
        %503 = vmatpush1.msra.mxu0 %v480
        %504 = vmatprep.subr.mxu0 0.0
        %505 = vmatpush1.msra.mxu0 %v481
        %506 = vmatprep.subr.mxu0 0.0
        %507 = vmatpush1.msra.mxu0 %v482
        %508 = vmatprep.subr.mxu0 0.0
        %509 = vmatpush1.msra.mxu0 %v483
        %510 = vmatprep.subr.mxu0 0.0
        %511 = vmatpush1.msra.mxu0 %v484
        %512 = vmatprep.subr.mxu0 0.0
        %513 = vmatpush1.msra.mxu0 %v485
        %514 = vmatprep.subr.mxu0 0.0
        %515 = vmatpush1.msra.mxu0 %v486
        %516 = vmatprep.subr.mxu0 0.0
        %517 = vmatpush1.msra.mxu0 %v487
        %518 = vmatprep.subr.mxu0 0.0
        %519 = vmatpush1.msra.mxu0 0.0
        %520 = vmatprep.subr.mxu0 0.0
        %521 = vmatpush1.msra.mxu0 0.0
        %522 = vmatprep.subr.mxu0 0.0
        %523 = vmatpush1.msra.mxu0 0.0
        %524 = vmatprep.subr.mxu0 0.0
        %525 = vmatpush1.msra.mxu0 0.0
        %526 = vmatprep.subr.mxu0 0.0
        %527 = vmatpush1.msra.mxu0 0.0
        %528 = vmatprep.subr.mxu0 0.0
        %529 = vmatpush1.msra.mxu0 0.0
        %530 = vmatprep.subr.mxu0 0.0
        %531 = vmatpush1.msra.mxu0 0.0
        %532 = vmatprep.subr.mxu0 0.0
        %533 = vmatpush1.msra.mxu0 0.0
        %534 = vmatprep.subr.mxu0 0.0
        %535 = vmatpush1.msra.mxu0 0.0
        %536 = vmatprep.subr.mxu0 0.0
        %537 = vmatpush1.msra.mxu0 0.0
        %538 = vmatprep.subr.mxu0 0.0
        %539 = vmatpush1.msra.mxu0 0.0
        %540 = vmatprep.subr.mxu0 0.0
        %541 = vmatpush1.msra.mxu0 0.0
        %542 = vmatprep.subr.mxu0 0.0
        %543 = vmatpush1.msra.mxu0 0.0
        %544 = vmatprep.subr.mxu0 0.0
        %545 = vmatpush1.msra.mxu0 0.0
        %546 = vmatprep.subr.mxu0 0.0
        %547 = vmatpush1.msra.mxu0 0.0
        %548 = vmatprep.subr.mxu0 0.0
        %549 = vmatpush1.msra.mxu0 0.0
        %550 = vmatprep.subr.mxu0 0.0
        %551 = vmatpush1.msra.mxu0 0.0
        %552 = vmatprep.subr.mxu0 0.0
        %553 = vmatpush1.msra.mxu0 0.0
        %554 = vmatprep.subr.mxu0 0.0
        %555 = vmatpush1.msra.mxu0 0.0
        %556 = vmatprep.subr.mxu0 0.0
        %557 = vmatpush1.msra.mxu0 0.0
        %558 = vmatprep.subr.mxu0 0.0
        %559 = vmatpush1.msra.mxu0 0.0
        %560 = vmatprep.subr.mxu0 0.0
        %561 = vmatpush1.msra.mxu0 0.0
        %562 = vmatprep.subr.mxu0 0.0
        %563 = vmatpush1.msra.mxu0 0.0
        %564 = vmatprep.subr.mxu0 0.0
        %565 = vmatpush1.msra.mxu0 0.0
        %566 = vmatprep.mubr.f32.mxu0 0.0
        %567 = vmatmul.mubr.f32.gmra.mrb[0].mxu0 %v497
        %v568 = vpop.f32.mrb[0].mxu0
        %v569 = vadd.f32 %v493, %v568
        %v570 = vpop.f32.mrb[0].mxu0
        %571 = vmatprep.mubr.f32.mxu0 0.0
        %572 = vmatmul.mubr.f32.gmra.mrb[0].mxu0 %v500
        %v573 = vpop.f32.mrb[0].mxu0
        %v574 = vadd.f32 %v493, %v573
        %v575 = vpop.f32.mrb[0].mxu0
        %576 = vdwg.mxu0
        %v577 = vld [vmem:[#allocation9] sm:$0xff]
        %v578 = vld [vmem:[#allocation9 + $0x8] sm:$0xff]
        %v579 = vld [vmem:[#allocation9 + $0x10] sm:$0xff]
        %v580 = vld [vmem:[#allocation9 + $0x18] sm:$0xff]
        %v581 = vld [vmem:[#allocation9 + $0x20] sm:$0xff]
        %v582 = vld [vmem:[#allocation9 + $0x28] sm:$0xff]
        %v583 = vld [vmem:[#allocation9 + $0x30] sm:$0xff]
        %v584 = vld [vmem:[#allocation9 + $0x38] sm:$0xff]
        %v585 = vld [vmem:[%s6] sm:$0x1]
        %v587 = vlaneseq
        %v588 = vshrl.u32 %v587, 7
        %v589 = vsub.s32 0, %v588
        %v590 = vrot.slane %v585, %v589
        %592 = vmatprep.subr.mxu0 0.0
        %593 = vmatpush1.msra.mxu0 %v577
        %594 = vmatprep.subr.mxu0 0.0
        %595 = vmatpush1.msra.mxu0 %v578
        %596 = vmatprep.subr.mxu0 0.0
        %597 = vmatpush1.msra.mxu0 %v579
        %598 = vmatprep.subr.mxu0 0.0
        %599 = vmatpush1.msra.mxu0 %v580
        %600 = vmatprep.subr.mxu0 0.0
        %601 = vmatpush1.msra.mxu0 %v581
        %602 = vmatprep.subr.mxu0 0.0
        %603 = vmatpush1.msra.mxu0 %v582
        %604 = vmatprep.subr.mxu0 0.0
        %605 = vmatpush1.msra.mxu0 %v583
        %606 = vmatprep.subr.mxu0 0.0
        %607 = vmatpush1.msra.mxu0 %v584
        %608 = vmatprep.subr.mxu0 0.0
        %609 = vmatpush1.msra.mxu0 0.0
        %610 = vmatprep.subr.mxu0 0.0
        %611 = vmatpush1.msra.mxu0 0.0
        %612 = vmatprep.subr.mxu0 0.0
        %613 = vmatpush1.msra.mxu0 0.0
        %614 = vmatprep.subr.mxu0 0.0
        %615 = vmatpush1.msra.mxu0 0.0
        %616 = vmatprep.subr.mxu0 0.0
        %617 = vmatpush1.msra.mxu0 0.0
        %618 = vmatprep.subr.mxu0 0.0
        %619 = vmatpush1.msra.mxu0 0.0
        %620 = vmatprep.subr.mxu0 0.0
        %621 = vmatpush1.msra.mxu0 0.0
        %622 = vmatprep.subr.mxu0 0.0
        %623 = vmatpush1.msra.mxu0 0.0
        %624 = vmatprep.subr.mxu0 0.0
        %625 = vmatpush1.msra.mxu0 0.0
        %626 = vmatprep.subr.mxu0 0.0
        %627 = vmatpush1.msra.mxu0 0.0
        %628 = vmatprep.subr.mxu0 0.0
        %629 = vmatpush1.msra.mxu0 0.0
        %630 = vmatprep.subr.mxu0 0.0
        %631 = vmatpush1.msra.mxu0 0.0
        %632 = vmatprep.subr.mxu0 0.0
        %633 = vmatpush1.msra.mxu0 0.0
        %634 = vmatprep.subr.mxu0 0.0
        %635 = vmatpush1.msra.mxu0 0.0
        %636 = vmatprep.subr.mxu0 0.0
        %637 = vmatpush1.msra.mxu0 0.0
        %638 = vmatprep.subr.mxu0 0.0
        %639 = vmatpush1.msra.mxu0 0.0
        %640 = vmatprep.subr.mxu0 0.0
        %641 = vmatpush1.msra.mxu0 0.0
        %642 = vmatprep.subr.mxu0 0.0
        %643 = vmatpush1.msra.mxu0 0.0
        %644 = vmatprep.subr.mxu0 0.0
        %645 = vmatpush1.msra.mxu0 0.0
        %646 = vmatprep.subr.mxu0 0.0
        %647 = vmatpush1.msra.mxu0 0.0
        %648 = vmatprep.subr.mxu0 0.0
        %649 = vmatpush1.msra.mxu0 0.0
        %650 = vmatprep.subr.mxu0 0.0
        %651 = vmatpush1.msra.mxu0 0.0
        %652 = vmatprep.subr.mxu0 0.0
        %653 = vmatpush1.msra.mxu0 0.0
        %654 = vmatprep.subr.mxu0 0.0
        %655 = vmatpush1.msra.mxu0 0.0
        %656 = vmatprep.mubr.f32.mxu0 0.0
        %657 = vmatmul.mubr.f32.gmra.mrb[0].mxu0 %v497
        %v658 = vpop.f32.mrb[0].mxu0
        %v659 = vadd.f32 %v590, %v658
        %v660 = vpop.f32.mrb[0].mxu0
        %661 = vmatprep.mubr.f32.mxu0 0.0
        %662 = vmatmul.mubr.f32.gmra.mrb[0].mxu0 %v500
        %v663 = vpop.f32.mrb[0].mxu0
        %v664 = vadd.f32 %v590, %v663
        %v665 = vpop.f32.mrb[0].mxu0
        %666 = vdwg.mxu0
        %v667 = vld [vmem:[#allocation10] sm:$0xff]
        %v668 = vld [vmem:[#allocation10 + $0x8] sm:$0xff]
        %v669 = vld [vmem:[#allocation10 + $0x10] sm:$0xff]
        %v670 = vld [vmem:[#allocation10 + $0x18] sm:$0xff]
        %v671 = vld [vmem:[#allocation10 + $0x20] sm:$0xff]
        %v672 = vld [vmem:[#allocation10 + $0x28] sm:$0xff]
        %v673 = vld [vmem:[#allocation10 + $0x30] sm:$0xff]
        %v674 = vld [vmem:[#allocation10 + $0x38] sm:$0xff]
        %v675 = vld [vmem:[%s7] sm:$0x1]
        %v677 = vlaneseq
        %v678 = vshrl.u32 %v677, 7
        %v679 = vsub.s32 0, %v678
        %v680 = vrot.slane %v675, %v679
        %682 = vmatprep.subr.mxu0 0.0
        %683 = vmatpush1.msra.mxu0 %v667
        %684 = vmatprep.subr.mxu0 0.0
        %685 = vmatpush1.msra.mxu0 %v668
        %686 = vmatprep.subr.mxu0 0.0
        %687 = vmatpush1.msra.mxu0 %v669
        %688 = vmatprep.subr.mxu0 0.0
        %689 = vmatpush1.msra.mxu0 %v670
        %690 = vmatprep.subr.mxu0 0.0
        %691 = vmatpush1.msra.mxu0 %v671
        %692 = vmatprep.subr.mxu0 0.0
        %693 = vmatpush1.msra.mxu0 %v672
        %694 = vmatprep.subr.mxu0 0.0
        %695 = vmatpush1.msra.mxu0 %v673
        %696 = vmatprep.subr.mxu0 0.0
        %697 = vmatpush1.msra.mxu0 %v674
        %698 = vmatprep.subr.mxu0 0.0
        %699 = vmatpush1.msra.mxu0 0.0
        %700 = vmatprep.subr.mxu0 0.0
        %701 = vmatpush1.msra.mxu0 0.0
        %702 = vmatprep.subr.mxu0 0.0
        %703 = vmatpush1.msra.mxu0 0.0
        %704 = vmatprep.subr.mxu0 0.0
        %705 = vmatpush1.msra.mxu0 0.0
        %706 = vmatprep.subr.mxu0 0.0
        %707 = vmatpush1.msra.mxu0 0.0
        %708 = vmatprep.subr.mxu0 0.0
        %709 = vmatpush1.msra.mxu0 0.0
        %710 = vmatprep.subr.mxu0 0.0
        %711 = vmatpush1.msra.mxu0 0.0
        %712 = vmatprep.subr.mxu0 0.0
        %713 = vmatpush1.msra.mxu0 0.0
        %714 = vmatprep.subr.mxu0 0.0
        %715 = vmatpush1.msra.mxu0 0.0
        %716 = vmatprep.subr.mxu0 0.0
        %717 = vmatpush1.msra.mxu0 0.0
        %718 = vmatprep.subr.mxu0 0.0
        %719 = vmatpush1.msra.mxu0 0.0
        %720 = vmatprep.subr.mxu0 0.0
        %721 = vmatpush1.msra.mxu0 0.0
        %722 = vmatprep.subr.mxu0 0.0
        %723 = vmatpush1.msra.mxu0 0.0
        %724 = vmatprep.subr.mxu0 0.0
        %725 = vmatpush1.msra.mxu0 0.0
        %726 = vmatprep.subr.mxu0 0.0
        %727 = vmatpush1.msra.mxu0 0.0
        %728 = vmatprep.subr.mxu0 0.0
        %729 = vmatpush1.msra.mxu0 0.0
        %730 = vmatprep.subr.mxu0 0.0
        %731 = vmatpush1.msra.mxu0 0.0
        %732 = vmatprep.subr.mxu0 0.0
        %733 = vmatpush1.msra.mxu0 0.0
        %734 = vmatprep.subr.mxu0 0.0
        %735 = vmatpush1.msra.mxu0 0.0
        %736 = vmatprep.subr.mxu0 0.0
        %737 = vmatpush1.msra.mxu0 0.0
        %738 = vmatprep.subr.mxu0 0.0
        %739 = vmatpush1.msra.mxu0 0.0
        %740 = vmatprep.subr.mxu0 0.0
        %741 = vmatpush1.msra.mxu0 0.0
        %742 = vmatprep.subr.mxu0 0.0
        %743 = vmatpush1.msra.mxu0 0.0
        %744 = vmatprep.subr.mxu0 0.0
        %745 = vmatpush1.msra.mxu0 0.0
        %746 = vmatprep.mubr.f32.mxu0 0.0
        %747 = vmatmul.mubr.f32.gmra.mrb[0].mxu0 %v497
        %v748 = vpop.f32.mrb[0].mxu0
        %v749 = vadd.f32 %v680, %v748
        %v750 = vpop.f32.mrb[0].mxu0
        %751 = vmatprep.mubr.f32.mxu0 0.0
        %752 = vmatmul.mubr.f32.gmra.mrb[0].mxu0 %v500
        %v753 = vpop.f32.mrb[0].mxu0
        %v754 = vadd.f32 %v680, %v753
        %v755 = vpop.f32.mrb[0].mxu0
        %756 = vdwg.mxu0
        %s757 = sld [smem:[#allocation2]]
        %vm758 = vcmask 130048
        %v760 = vsel %vm758, %v569, 0
        %v763 = vsel %vm758, %v574, 0
        %v766 = vsel %vm758, %v659, 0
        %v769 = vsel %vm758, %v664, 0
        %771 = vmatprep.subr.mxu0 0.0
        %772 = vmatpush1.xpose.msra.mxu0 %v766
        %773 = vmatprep.subr.mxu0 0.0
        %774 = vmatpush1.xpose.msra.mxu0 %v769
        %775 = vmatprep.subr.mxu0 0.0
        %776 = vmatpush1.xpose.msra.mxu0 0.0
        %777 = vmatprep.subr.mxu0 0.0
        %778 = vmatpush1.xpose.msra.mxu0 0.0
        %779 = vmatprep.subr.mxu0 0.0
        %780 = vmatpush1.xpose.msra.mxu0 0.0
        %781 = vmatprep.subr.mxu0 0.0
        %782 = vmatpush1.xpose.msra.mxu0 0.0
        %783 = vmatprep.subr.mxu0 0.0
        %784 = vmatpush1.xpose.msra.mxu0 0.0
        %785 = vmatprep.subr.mxu0 0.0
        %786 = vmatpush1.xpose.msra.mxu0 0.0
        %787 = vmatprep.subr.mxu0 0.0
        %788 = vmatpush1.xpose.msra.mxu0 0.0
        %789 = vmatprep.subr.mxu0 0.0
        %790 = vmatpush1.xpose.msra.mxu0 0.0
        %791 = vmatprep.subr.mxu0 0.0
        %792 = vmatpush1.xpose.msra.mxu0 0.0
        %793 = vmatprep.subr.mxu0 0.0
        %794 = vmatpush1.xpose.msra.mxu0 0.0
        %795 = vmatprep.subr.mxu0 0.0
        %796 = vmatpush1.xpose.msra.mxu0 0.0
        %797 = vmatprep.subr.mxu0 0.0
        %798 = vmatpush1.xpose.msra.mxu0 0.0
        %799 = vmatprep.subr.mxu0 0.0
        %800 = vmatpush1.xpose.msra.mxu0 0.0
        %801 = vmatprep.subr.mxu0 0.0
        %802 = vmatpush1.xpose.msra.mxu0 0.0
        %803 = vmatprep.subr.mxu0 0.0
        %804 = vmatpush1.xpose.msra.mxu0 0.0
        %805 = vmatprep.subr.mxu0 0.0
        %806 = vmatpush1.xpose.msra.mxu0 0.0
        %807 = vmatprep.subr.mxu0 0.0
        %808 = vmatpush1.xpose.msra.mxu0 0.0
        %809 = vmatprep.subr.mxu0 0.0
        %810 = vmatpush1.xpose.msra.mxu0 0.0
        %811 = vmatprep.subr.mxu0 0.0
        %812 = vmatpush1.xpose.msra.mxu0 0.0
        %813 = vmatprep.subr.mxu0 0.0
        %814 = vmatpush1.xpose.msra.mxu0 0.0
        %815 = vmatprep.subr.mxu0 0.0
        %816 = vmatpush1.xpose.msra.mxu0 0.0
        %817 = vmatprep.subr.mxu0 0.0
        %818 = vmatpush1.xpose.msra.mxu0 0.0
        %819 = vmatprep.subr.mxu0 0.0
        %820 = vmatpush1.xpose.msra.mxu0 0.0
        %821 = vmatprep.subr.mxu0 0.0
        %822 = vmatpush1.xpose.msra.mxu0 0.0
        %823 = vmatprep.subr.mxu0 0.0
        %824 = vmatpush1.xpose.msra.mxu0 0.0
        %825 = vmatprep.subr.mxu0 0.0
        %826 = vmatpush1.xpose.msra.mxu0 0.0
        %827 = vmatprep.subr.mxu0 0.0
        %828 = vmatpush1.xpose.msra.mxu0 0.0
        %829 = vmatprep.subr.mxu0 0.0
        %830 = vmatpush1.xpose.msra.mxu0 0.0
        %831 = vmatprep.subr.mxu0 0.0
        %832 = vmatpush1.xpose.msra.mxu0 0.0
        %833 = vmatprep.subr.mxu0 0.0
        %834 = vmatpush1.xpose.msra.mxu0 0.0
        %835 = vmatprep.mubr.f32.mxu0 0.0
        %836 = vmatmul.mubr.f32.gmra.mrb[0].mxu0 %v760
        %v837 = vpop.f32.mrb[0].mxu0
        %v838 = vadd.f32 0.0, %v837
        %v839 = vpop.f32.mrb[0].mxu0
        %840 = vmatprep.mubr.f32.mxu0 0.0
        %841 = vmatmul.mubr.f32.gmra.mrb[0].mxu0 %v763
        %v842 = vpop.f32.mrb[0].mxu0
        %v843 = vadd.f32 0.0, %v842
        %v844 = vpop.f32.mrb[0].mxu0
        %845 = vdwg.mxu0
        %v846 = vmul.f32 %v838, 0.25
        %v847 = vmul.f32 %v843, 0.25
        %vm850 = vcmask 1046528
        %v851 = vrot.slane %v846, 1
        %v852 = vrot.slane %v847, 1
        %v853 = vsel %vm850, %v851, %v852
        %v855 = vsel %vm850, %v852, 0.0
        %vm856 = vcmask 1040384
        %v857 = vrot.slane %v846, 7
        %v858 = vrot.slane %v847, 7
        %v859 = vsel %vm856, %v857, %v858
        %v861 = vsel %vm856, 0.0, %v857
        %863 = vrot.lane.b32.xlu0 %v861, 115
        %v864 = vpop.permute.xlu0 %863
        %865 = vrot.lane.b32.xlu0 %v859, 115
        %v866 = vpop.permute.xlu0 %865
        %869 = vrot.lane.b32.xlu0 %v846, 3
        %v870 = vpop.permute.xlu0 %869
        %871 = vrot.lane.b32.xlu0 %v847, 3
        %v872 = vpop.permute.xlu0 %871
        %vm875 = vcmask 23552
        %v876 = vsel %vm875, %v864, %v870
        %v877 = vsel %vm875, %v866, %v872
        %s878 = sld [smem:[#allocation13]]
        %v879 = vstv %s878
        %v880 = vmul.f32 %v879, %v876
        %v881 = vmul.f32 %v879, %v877
        %v882 = vadd.f32 %v880, 0.0
        %v883 = vadd.f32 %v881, 0.0
        %884 = vrot.lane.b32.xlu0 %v861, 114
        %v885 = vpop.permute.xlu0 %884
        %886 = vrot.lane.b32.xlu0 %v859, 114
        %v887 = vpop.permute.xlu0 %886
        %890 = vrot.lane.b32.xlu0 %v846, 2
        %v891 = vpop.permute.xlu0 %890
        %892 = vrot.lane.b32.xlu0 %v847, 2
        %v893 = vpop.permute.xlu0 %892
        %vm896 = vcmask 15360
        %v897 = vsel %vm896, %v885, %v891
        %v898 = vsel %vm896, %v887, %v893
        %s899 = sld [smem:[#allocation13 + $0x1]]
        %v900 = vstv %s899
        %v901 = vmul.f32 %v900, %v897
        %v902 = vmul.f32 %v900, %v898
        %v903 = vadd.f32 %v882, %v901
        %v904 = vadd.f32 %v883, %v902
        %905 = vrot.lane.b32.xlu0 %v861, 113
        %v906 = vpop.permute.xlu0 %905
        %907 = vrot.lane.b32.xlu0 %v859, 113
        %v908 = vpop.permute.xlu0 %907
        %911 = vrot.lane.b32.xlu0 %v846, 1
        %v912 = vpop.permute.xlu0 %911
        %913 = vrot.lane.b32.xlu0 %v847, 1
        %v914 = vpop.permute.xlu0 %913
        %vm917 = vcmask 7168
        %v918 = vsel %vm917, %v906, %v912
        %v919 = vsel %vm917, %v908, %v914
        %s920 = sld [smem:[#allocation13 + $0x2]]
        %v921 = vstv %s920
        %v922 = vmul.f32 %v921, %v918
        %v923 = vmul.f32 %v921, %v919
        %v924 = vadd.f32 %v903, %v922
        %v925 = vadd.f32 %v904, %v923
        %s926 = sld [smem:[#allocation13 + $0x3]]
        %v927 = vstv %s926
        %v928 = vmul.f32 %v927, %v846
        %v929 = vmul.f32 %v927, %v847
        %v930 = vadd.f32 %v924, %v928
        %v931 = vadd.f32 %v925, %v929
        %932 = vrot.lane.b32.xlu0 %v846, 127
        %v933 = vpop.permute.xlu0 %932
        %934 = vrot.lane.b32.xlu0 %v847, 127
        %v935 = vpop.permute.xlu0 %934
        %939 = vrot.lane.b32.xlu0 %v853, 15
        %v940 = vpop.permute.xlu0 %939
        %941 = vrot.lane.b32.xlu0 %v855, 15
        %v942 = vpop.permute.xlu0 %941
        %vm945 = vcmask 121856
        %v946 = vsel %vm945, %v933, %v940
        %v947 = vsel %vm945, %v935, %v942
        %s948 = sld [smem:[#allocation13 + $0x4]]
        %v949 = vstv %s948
        %v950 = vmul.f32 %v949, %v946
        %v951 = vmul.f32 %v949, %v947
        %v952 = vadd.f32 %v930, %v950
        %v953 = vadd.f32 %v931, %v951
        %954 = vrot.lane.b32.xlu0 %v846, 126
        %v955 = vpop.permute.xlu0 %954
        %956 = vrot.lane.b32.xlu0 %v847, 126
        %v957 = vpop.permute.xlu0 %956
        %960 = vrot.lane.b32.xlu0 %v853, 14
        %v961 = vpop.permute.xlu0 %960
        %962 = vrot.lane.b32.xlu0 %v855, 14
        %v963 = vpop.permute.xlu0 %962
        %vm966 = vcmask 113664
        %v967 = vsel %vm966, %v955, %v961
        %v968 = vsel %vm966, %v957, %v963
        %s969 = sld [smem:[#allocation13 + $0x5]]
        %v970 = vstv %s969
        %v971 = vmul.f32 %v970, %v967
        %v972 = vmul.f32 %v970, %v968
        %v973 = vadd.f32 %v952, %v971
        %v974 = vadd.f32 %v953, %v972
        %975 = vrot.lane.b32.xlu0 %v846, 125
        %v976 = vpop.permute.xlu0 %975
        %977 = vrot.lane.b32.xlu0 %v847, 125
        %v978 = vpop.permute.xlu0 %977
        %981 = vrot.lane.b32.xlu0 %v853, 13
        %v982 = vpop.permute.xlu0 %981
        %983 = vrot.lane.b32.xlu0 %v855, 13
        %v984 = vpop.permute.xlu0 %983
        %vm987 = vcmask 105472
        %v988 = vsel %vm987, %v976, %v982
        %v989 = vsel %vm987, %v978, %v984
        %s990 = sld [smem:[#allocation13 + $0x6]]
        %v991 = vstv %s990
        %v992 = vmul.f32 %v991, %v988
        %v993 = vmul.f32 %v991, %v989
        %v994 = vadd.f32 %v973, %v992
        %v995 = vadd.f32 %v974, %v993
        %v996 = vstv %s757
        %v997 = vadd.f32 %v994, %v996
        %v998 = vadd.f32 %v995, %v996
        %v999 = vadd.f32 %v846, %v997
        %v1000 = vadd.f32 %v847, %v998
        %v1001 = vsel %vm758, %v999, -inf
        %1002 = vmax.xlane.f32.xlu0 %v1001
        %v1003 = vpop.xlane.xlu0 %1002
        %v1004 = vsel %vm758, %v1000, -inf
        %1005 = vmax.xlane.f32.xlu0 %v1004
        %v1006 = vpop.xlane.xlu0 %1005
        %v1007 = vsub.f32 %v999, %v1003
        %v1008 = vsub.f32 %v1000, %v1006
        %v1009 = vmul.f32 %v1007, 1.442695
        %v1010 = vpow.pop %v1009
        %v1011 = vmul.f32 %v1008, 1.442695
        %v1012 = vpow.pop %v1011
        %v1013 = vsel %vm758, %v1010, 0.0
        %1014 = vadd.xlane.f32.xlu0 %v1013
        %v1015 = vpop.xlane.xlu0 %1014
        %v1016 = vsel %vm758, %v1012, 0.0
        %1017 = vadd.xlane.f32.xlu0 %v1016
        %v1018 = vpop.xlane.xlu0 %1017
        %v1019 = vrcp.pop %v1015
        %v1020 = vmul.f32 %v1010, %v1019
        %v1021 = vrcp.pop %v1018
        %v1022 = vmul.f32 %v1012, %v1021
        %v1024 = vsel %vm758, %v1020, 0
        %v1027 = vsel %vm758, %v1022, 0
        %1029 = vmatprep.subr.mxu0 0.0
        %1030 = vmatpush1.msra.mxu0 %v749
        %1031 = vmatprep.subr.mxu0 0.0
        %1032 = vmatpush1.msra.mxu0 %v754
        %1033 = vmatprep.subr.mxu0 0.0
        %1034 = vmatpush1.msra.mxu0 0.0
        %1035 = vmatprep.subr.mxu0 0.0
        %1036 = vmatpush1.msra.mxu0 0.0
        %1037 = vmatprep.subr.mxu0 0.0
        %1038 = vmatpush1.msra.mxu0 0.0
        %1039 = vmatprep.subr.mxu0 0.0
        %1040 = vmatpush1.msra.mxu0 0.0
        %1041 = vmatprep.subr.mxu0 0.0
        %1042 = vmatpush1.msra.mxu0 0.0
        %1043 = vmatprep.subr.mxu0 0.0
        %1044 = vmatpush1.msra.mxu0 0.0
        %1045 = vmatprep.subr.mxu0 0.0
        %1046 = vmatpush1.msra.mxu0 0.0
        %1047 = vmatprep.subr.mxu0 0.0
        %1048 = vmatpush1.msra.mxu0 0.0
        %1049 = vmatprep.subr.mxu0 0.0
        %1050 = vmatpush1.msra.mxu0 0.0
        %1051 = vmatprep.subr.mxu0 0.0
        %1052 = vmatpush1.msra.mxu0 0.0
        %1053 = vmatprep.subr.mxu0 0.0
        %1054 = vmatpush1.msra.mxu0 0.0
        %1055 = vmatprep.subr.mxu0 0.0
        %1056 = vmatpush1.msra.mxu0 0.0
        %1057 = vmatprep.subr.mxu0 0.0
        %1058 = vmatpush1.msra.mxu0 0.0
        %1059 = vmatprep.subr.mxu0 0.0
        %1060 = vmatpush1.msra.mxu0 0.0
        %1061 = vmatprep.subr.mxu0 0.0
        %1062 = vmatpush1.msra.mxu0 0.0
        %1063 = vmatprep.subr.mxu0 0.0
        %1064 = vmatpush1.msra.mxu0 0.0
        %1065 = vmatprep.subr.mxu0 0.0
        %1066 = vmatpush1.msra.mxu0 0.0
        %1067 = vmatprep.subr.mxu0 0.0
        %1068 = vmatpush1.msra.mxu0 0.0
        %1069 = vmatprep.subr.mxu0 0.0
        %1070 = vmatpush1.msra.mxu0 0.0
        %1071 = vmatprep.subr.mxu0 0.0
        %1072 = vmatpush1.msra.mxu0 0.0
        %1073 = vmatprep.subr.mxu0 0.0
        %1074 = vmatpush1.msra.mxu0 0.0
        %1075 = vmatprep.subr.mxu0 0.0
        %1076 = vmatpush1.msra.mxu0 0.0
        %1077 = vmatprep.subr.mxu0 0.0
        %1078 = vmatpush1.msra.mxu0 0.0
        %1079 = vmatprep.subr.mxu0 0.0
        %1080 = vmatpush1.msra.mxu0 0.0
        %1081 = vmatprep.subr.mxu0 0.0
        %1082 = vmatpush1.msra.mxu0 0.0
        %1083 = vmatprep.subr.mxu0 0.0
        %1084 = vmatpush1.msra.mxu0 0.0
        %1085 = vmatprep.subr.mxu0 0.0
        %1086 = vmatpush1.msra.mxu0 0.0
        %1087 = vmatprep.subr.mxu0 0.0
        %1088 = vmatpush1.msra.mxu0 0.0
        %1089 = vmatprep.subr.mxu0 0.0
        %1090 = vmatpush1.msra.mxu0 0.0
        %1091 = vmatprep.subr.mxu0 0.0
        %1092 = vmatpush1.msra.mxu0 0.0
        %1093 = vmatprep.mubr.f32.mxu0 0.0
        %1094 = vmatmul.mubr.f32.gmra.mrb[0].mxu0 %v1024
        %v1095 = vpop.f32.mrb[0].mxu0
        %v1096 = vadd.f32 0.0, %v1095
        %v1097 = vpop.f32.mrb[0].mxu0
        %1098 = vmatprep.mubr.f32.mxu0 0.0
        %1099 = vmatmul.mubr.f32.gmra.mrb[0].mxu0 %v1027
        %v1100 = vpop.f32.mrb[0].mxu0
        %v1101 = vadd.f32 0.0, %v1100
        %v1102 = vpop.f32.mrb[0].mxu0
        %1103 = vdwg.mxu0
        %v1104 = vld [vmem:[#allocation12] sm:$0xff]
        %v1105 = vld [vmem:[#allocation12 + $0x8] sm:$0xff]
        %1106 = vrot.lane.b32.xlu0 %v569, 112
        %v1107 = vpop.permute.xlu0 %1106
        %1108 = vrot.lane.b32.xlu0 %v574, 112
        %v1109 = vpop.permute.xlu0 %1108
        %1110 = vrot.lane.b32.xlu0 %v659, 112
        %v1111 = vpop.permute.xlu0 %1110
        %1112 = vrot.lane.b32.xlu0 %v664, 112
        %v1113 = vpop.permute.xlu0 %1112
        %v1114 = vsel %vm758, %v1107, 0
        %v1116 = vsel %vm758, %v1109, 0
        %v1118 = vsel %vm758, %v1111, 0
        %v1120 = vsel %vm758, %v1113, 0
        %1122 = vmatprep.subr.mxu0 0.0
        %1123 = vmatpush1.xpose.msra.mxu0 %v1118
        %1124 = vmatprep.subr.mxu0 0.0
        %1125 = vmatpush1.xpose.msra.mxu0 %v1120
        %1126 = vmatprep.subr.mxu0 0.0
        %1127 = vmatpush1.xpose.msra.mxu0 0.0
        %1128 = vmatprep.subr.mxu0 0.0
        %1129 = vmatpush1.xpose.msra.mxu0 0.0
        %1130 = vmatprep.subr.mxu0 0.0
        %1131 = vmatpush1.xpose.msra.mxu0 0.0
        %1132 = vmatprep.subr.mxu0 0.0
        %1133 = vmatpush1.xpose.msra.mxu0 0.0
        %1134 = vmatprep.subr.mxu0 0.0
        %1135 = vmatpush1.xpose.msra.mxu0 0.0
        %1136 = vmatprep.subr.mxu0 0.0
        %1137 = vmatpush1.xpose.msra.mxu0 0.0
        %1138 = vmatprep.subr.mxu0 0.0
        %1139 = vmatpush1.xpose.msra.mxu0 0.0
        %1140 = vmatprep.subr.mxu0 0.0
        %1141 = vmatpush1.xpose.msra.mxu0 0.0
        %1142 = vmatprep.subr.mxu0 0.0
        %1143 = vmatpush1.xpose.msra.mxu0 0.0
        %1144 = vmatprep.subr.mxu0 0.0
        %1145 = vmatpush1.xpose.msra.mxu0 0.0
        %1146 = vmatprep.subr.mxu0 0.0
        %1147 = vmatpush1.xpose.msra.mxu0 0.0
        %1148 = vmatprep.subr.mxu0 0.0
        %1149 = vmatpush1.xpose.msra.mxu0 0.0
        %1150 = vmatprep.subr.mxu0 0.0
        %1151 = vmatpush1.xpose.msra.mxu0 0.0
        %1152 = vmatprep.subr.mxu0 0.0
        %1153 = vmatpush1.xpose.msra.mxu0 0.0
        %1154 = vmatprep.subr.mxu0 0.0
        %1155 = vmatpush1.xpose.msra.mxu0 0.0
        %1156 = vmatprep.subr.mxu0 0.0
        %1157 = vmatpush1.xpose.msra.mxu0 0.0
        %1158 = vmatprep.subr.mxu0 0.0
        %1159 = vmatpush1.xpose.msra.mxu0 0.0
        %1160 = vmatprep.subr.mxu0 0.0
        %1161 = vmatpush1.xpose.msra.mxu0 0.0
        %1162 = vmatprep.subr.mxu0 0.0
        %1163 = vmatpush1.xpose.msra.mxu0 0.0
        %1164 = vmatprep.subr.mxu0 0.0
        %1165 = vmatpush1.xpose.msra.mxu0 0.0
        %1166 = vmatprep.subr.mxu0 0.0
        %1167 = vmatpush1.xpose.msra.mxu0 0.0
        %1168 = vmatprep.subr.mxu0 0.0
        %1169 = vmatpush1.xpose.msra.mxu0 0.0
        %1170 = vmatprep.subr.mxu0 0.0
        %1171 = vmatpush1.xpose.msra.mxu0 0.0
        %1172 = vmatprep.subr.mxu0 0.0
        %1173 = vmatpush1.xpose.msra.mxu0 0.0
        %1174 = vmatprep.subr.mxu0 0.0
        %1175 = vmatpush1.xpose.msra.mxu0 0.0
        %1176 = vmatprep.subr.mxu0 0.0
        %1177 = vmatpush1.xpose.msra.mxu0 0.0
        %1178 = vmatprep.subr.mxu0 0.0
        %1179 = vmatpush1.xpose.msra.mxu0 0.0
        %1180 = vmatprep.subr.mxu0 0.0
        %1181 = vmatpush1.xpose.msra.mxu0 0.0
        %1182 = vmatprep.subr.mxu0 0.0
        %1183 = vmatpush1.xpose.msra.mxu0 0.0
        %1184 = vmatprep.subr.mxu0 0.0
        %1185 = vmatpush1.xpose.msra.mxu0 0.0
        %1186 = vmatprep.mubr.f32.mxu0 0.0
        %1187 = vmatmul.mubr.f32.gmra.mrb[0].mxu0 %v1114
        %v1188 = vpop.f32.mrb[0].mxu0
        %v1189 = vadd.f32 0.0, %v1188
        %v1190 = vpop.f32.mrb[0].mxu0
        %1191 = vmatprep.mubr.f32.mxu0 0.0
        %1192 = vmatmul.mubr.f32.gmra.mrb[0].mxu0 %v1116
        %v1193 = vpop.f32.mrb[0].mxu0
        %v1194 = vadd.f32 0.0, %v1193
        %v1195 = vpop.f32.mrb[0].mxu0
        %1196 = vdwg.mxu0
        %v1197 = vmul.f32 %v1189, 0.25
        %v1198 = vmul.f32 %v1194, 0.25
        %v1201 = vrot.slane %v1197, 1
        %v1202 = vrot.slane %v1198, 1
        %v1203 = vsel %vm850, %v1201, %v1202
        %v1205 = vsel %vm850, %v1202, 0.0
        %v1206 = vrot.slane %v1197, 7
        %v1207 = vrot.slane %v1198, 7
        %v1208 = vsel %vm856, %v1206, %v1207
        %v1210 = vsel %vm856, 0.0, %v1206
        %1212 = vrot.lane.b32.xlu0 %v1210, 115
        %v1213 = vpop.permute.xlu0 %1212
        %1214 = vrot.lane.b32.xlu0 %v1208, 115
        %v1215 = vpop.permute.xlu0 %1214
        %1218 = vrot.lane.b32.xlu0 %v1197, 3
        %v1219 = vpop.permute.xlu0 %1218
        %1220 = vrot.lane.b32.xlu0 %v1198, 3
        %v1221 = vpop.permute.xlu0 %1220
        %v1224 = vsel %vm875, %v1213, %v1219
        %v1225 = vsel %vm875, %v1215, %v1221
        %v1226 = vmul.f32 %v879, %v1224
        %v1227 = vmul.f32 %v879, %v1225
        %v1228 = vadd.f32 %v1226, 0.0
        %v1229 = vadd.f32 %v1227, 0.0
        %1230 = vrot.lane.b32.xlu0 %v1210, 114
        %v1231 = vpop.permute.xlu0 %1230
        %1232 = vrot.lane.b32.xlu0 %v1208, 114
        %v1233 = vpop.permute.xlu0 %1232
        %1236 = vrot.lane.b32.xlu0 %v1197, 2
        %v1237 = vpop.permute.xlu0 %1236
        %1238 = vrot.lane.b32.xlu0 %v1198, 2
        %v1239 = vpop.permute.xlu0 %1238
        %v1242 = vsel %vm896, %v1231, %v1237
        %v1243 = vsel %vm896, %v1233, %v1239
        %v1244 = vmul.f32 %v900, %v1242
        %v1245 = vmul.f32 %v900, %v1243
        %v1246 = vadd.f32 %v1228, %v1244
        %v1247 = vadd.f32 %v1229, %v1245
        %1248 = vrot.lane.b32.xlu0 %v1210, 113
        %v1249 = vpop.permute.xlu0 %1248
        %1250 = vrot.lane.b32.xlu0 %v1208, 113
        %v1251 = vpop.permute.xlu0 %1250
        %1254 = vrot.lane.b32.xlu0 %v1197, 1
        %v1255 = vpop.permute.xlu0 %1254
        %1256 = vrot.lane.b32.xlu0 %v1198, 1
        %v1257 = vpop.permute.xlu0 %1256
        %v1260 = vsel %vm917, %v1249, %v1255
        %v1261 = vsel %vm917, %v1251, %v1257
        %v1262 = vmul.f32 %v921, %v1260
        %v1263 = vmul.f32 %v921, %v1261
        %v1264 = vadd.f32 %v1246, %v1262
        %v1265 = vadd.f32 %v1247, %v1263
        %v1266 = vmul.f32 %v927, %v1197
        %v1267 = vmul.f32 %v927, %v1198
        %v1268 = vadd.f32 %v1264, %v1266
        %v1269 = vadd.f32 %v1265, %v1267
        %1270 = vrot.lane.b32.xlu0 %v1197, 127
        %v1271 = vpop.permute.xlu0 %1270
        %1272 = vrot.lane.b32.xlu0 %v1198, 127
        %v1273 = vpop.permute.xlu0 %1272
        %1277 = vrot.lane.b32.xlu0 %v1203, 15
        %v1278 = vpop.permute.xlu0 %1277
        %1279 = vrot.lane.b32.xlu0 %v1205, 15
        %v1280 = vpop.permute.xlu0 %1279
        %v1283 = vsel %vm945, %v1271, %v1278
        %v1284 = vsel %vm945, %v1273, %v1280
        %v1285 = vmul.f32 %v949, %v1283
        %v1286 = vmul.f32 %v949, %v1284
        %v1287 = vadd.f32 %v1268, %v1285
        %v1288 = vadd.f32 %v1269, %v1286
        %1289 = vrot.lane.b32.xlu0 %v1197, 126
        %v1290 = vpop.permute.xlu0 %1289
        %1291 = vrot.lane.b32.xlu0 %v1198, 126
        %v1292 = vpop.permute.xlu0 %1291
        %1295 = vrot.lane.b32.xlu0 %v1203, 14
        %v1296 = vpop.permute.xlu0 %1295
        %1297 = vrot.lane.b32.xlu0 %v1205, 14
        %v1298 = vpop.permute.xlu0 %1297
        %v1301 = vsel %vm966, %v1290, %v1296
        %v1302 = vsel %vm966, %v1292, %v1298
        %v1303 = vmul.f32 %v970, %v1301
        %v1304 = vmul.f32 %v970, %v1302
        %v1305 = vadd.f32 %v1287, %v1303
        %v1306 = vadd.f32 %v1288, %v1304
        %1307 = vrot.lane.b32.xlu0 %v1197, 125
        %v1308 = vpop.permute.xlu0 %1307
        %1309 = vrot.lane.b32.xlu0 %v1198, 125
        %v1310 = vpop.permute.xlu0 %1309
        %1313 = vrot.lane.b32.xlu0 %v1203, 13
        %v1314 = vpop.permute.xlu0 %1313
        %1315 = vrot.lane.b32.xlu0 %v1205, 13
        %v1316 = vpop.permute.xlu0 %1315
        %v1319 = vsel %vm987, %v1308, %v1314
        %v1320 = vsel %vm987, %v1310, %v1316
        %v1321 = vmul.f32 %v991, %v1319
        %v1322 = vmul.f32 %v991, %v1320
        %v1323 = vadd.f32 %v1305, %v1321
        %v1324 = vadd.f32 %v1306, %v1322
        %v1325 = vadd.f32 %v1323, %v996
        %v1326 = vadd.f32 %v1324, %v996
        %v1327 = vadd.f32 %v1197, %v1325
        %v1328 = vadd.f32 %v1198, %v1326
        %v1329 = vsel %vm758, %v1327, -inf
        %1330 = vmax.xlane.f32.xlu0 %v1329
        %v1331 = vpop.xlane.xlu0 %1330
        %v1332 = vsel %vm758, %v1328, -inf
        %1333 = vmax.xlane.f32.xlu0 %v1332
        %v1334 = vpop.xlane.xlu0 %1333
        %v1335 = vsub.f32 %v1327, %v1331
        %v1336 = vsub.f32 %v1328, %v1334
        %v1337 = vmul.f32 %v1335, 1.442695
        %v1338 = vpow.pop %v1337
        %v1339 = vmul.f32 %v1336, 1.442695
        %v1340 = vpow.pop %v1339
        %v1341 = vsel %vm758, %v1338, 0.0
        %1342 = vadd.xlane.f32.xlu0 %v1341
        %v1343 = vpop.xlane.xlu0 %1342
        %v1344 = vsel %vm758, %v1340, 0.0
        %1345 = vadd.xlane.f32.xlu0 %v1344
        %v1346 = vpop.xlane.xlu0 %1345
        %v1347 = vrcp.pop %v1343
        %v1348 = vmul.f32 %v1338, %v1347
        %v1349 = vrcp.pop %v1346
        %v1350 = vmul.f32 %v1340, %v1349
        %1353 = vrot.lane.b32.xlu0 %v749, 112
        %v1354 = vpop.permute.xlu0 %1353
        %1355 = vrot.lane.b32.xlu0 %v754, 112
        %v1356 = vpop.permute.xlu0 %1355
        %v1360 = vsel %vm758, %v1348, 0
        %v1363 = vsel %vm758, %v1350, 0
        %1365 = vmatprep.subr.mxu0 0.0
        %1366 = vmatpush1.msra.mxu0 %v1354
        %1367 = vmatprep.subr.mxu0 0.0
        %1368 = vmatpush1.msra.mxu0 %v1356
        %1369 = vmatprep.subr.mxu0 0.0
        %1370 = vmatpush1.msra.mxu0 0.0
        %1371 = vmatprep.subr.mxu0 0.0
        %1372 = vmatpush1.msra.mxu0 0.0
        %1373 = vmatprep.subr.mxu0 0.0
        %1374 = vmatpush1.msra.mxu0 0.0
        %1375 = vmatprep.subr.mxu0 0.0
        %1376 = vmatpush1.msra.mxu0 0.0
        %1377 = vmatprep.subr.mxu0 0.0
        %1378 = vmatpush1.msra.mxu0 0.0
        %1379 = vmatprep.subr.mxu0 0.0
        %1380 = vmatpush1.msra.mxu0 0.0
        %1381 = vmatprep.subr.mxu0 0.0
        %1382 = vmatpush1.msra.mxu0 0.0
        %1383 = vmatprep.subr.mxu0 0.0
        %1384 = vmatpush1.msra.mxu0 0.0
        %1385 = vmatprep.subr.mxu0 0.0
        %1386 = vmatpush1.msra.mxu0 0.0
        %1387 = vmatprep.subr.mxu0 0.0
        %1388 = vmatpush1.msra.mxu0 0.0
        %1389 = vmatprep.subr.mxu0 0.0
        %1390 = vmatpush1.msra.mxu0 0.0
        %1391 = vmatprep.subr.mxu0 0.0
        %1392 = vmatpush1.msra.mxu0 0.0
        %1393 = vmatprep.subr.mxu0 0.0
        %1394 = vmatpush1.msra.mxu0 0.0
        %1395 = vmatprep.subr.mxu0 0.0
        %1396 = vmatpush1.msra.mxu0 0.0
        %1397 = vmatprep.subr.mxu0 0.0
        %1398 = vmatpush1.msra.mxu0 0.0
        %1399 = vmatprep.subr.mxu0 0.0
        %1400 = vmatpush1.msra.mxu0 0.0
        %1401 = vmatprep.subr.mxu0 0.0
        %1402 = vmatpush1.msra.mxu0 0.0
        %1403 = vmatprep.subr.mxu0 0.0
        %1404 = vmatpush1.msra.mxu0 0.0
        %1405 = vmatprep.subr.mxu0 0.0
        %1406 = vmatpush1.msra.mxu0 0.0
        %1407 = vmatprep.subr.mxu0 0.0
        %1408 = vmatpush1.msra.mxu0 0.0
        %1409 = vmatprep.subr.mxu0 0.0
        %1410 = vmatpush1.msra.mxu0 0.0
        %1411 = vmatprep.subr.mxu0 0.0
        %1412 = vmatpush1.msra.mxu0 0.0
        %1413 = vmatprep.subr.mxu0 0.0
        %1414 = vmatpush1.msra.mxu0 0.0
        %1415 = vmatprep.subr.mxu0 0.0
        %1416 = vmatpush1.msra.mxu0 0.0
        %1417 = vmatprep.subr.mxu0 0.0
        %1418 = vmatpush1.msra.mxu0 0.0
        %1419 = vmatprep.subr.mxu0 0.0
        %1420 = vmatpush1.msra.mxu0 0.0
        %1421 = vmatprep.subr.mxu0 0.0
        %1422 = vmatpush1.msra.mxu0 0.0
        %1423 = vmatprep.subr.mxu0 0.0
        %1424 = vmatpush1.msra.mxu0 0.0
        %1425 = vmatprep.subr.mxu0 0.0
        %1426 = vmatpush1.msra.mxu0 0.0
        %1427 = vmatprep.subr.mxu0 0.0
        %1428 = vmatpush1.msra.mxu0 0.0
        %1429 = vmatprep.mubr.f32.mxu0 0.0
        %1430 = vmatmul.mubr.f32.gmra.mrb[0].mxu0 %v1360
        %v1431 = vpop.f32.mrb[0].mxu0
        %v1432 = vadd.f32 0.0, %v1431
        %v1433 = vpop.f32.mrb[0].mxu0
        %1434 = vmatprep.mubr.f32.mxu0 0.0
        %1435 = vmatmul.mubr.f32.gmra.mrb[0].mxu0 %v1363
        %v1436 = vpop.f32.mrb[0].mxu0
        %v1437 = vadd.f32 0.0, %v1436
        %v1438 = vpop.f32.mrb[0].mxu0
        %1439 = vdwg.mxu0
        %v1440 = vld [vmem:[#allocation12 + $0x10] sm:$0xff]
        %v1441 = vld [vmem:[#allocation12 + $0x18] sm:$0xff]
        %v1443 = vsel %vm758, %v1432, 0
        %v1446 = vsel %vm758, %v1437, 0
        %1448 = vmatprep.subr.mxu0 0.0
        %1449 = vmatpush1.msra.mxu0 %v1440
        %1450 = vmatprep.subr.mxu0 0.0
        %1451 = vmatpush1.msra.mxu0 %v1441
        %1452 = vmatprep.subr.mxu0 0.0
        %1453 = vmatpush1.msra.mxu0 0.0
        %1454 = vmatprep.subr.mxu0 0.0
        %1455 = vmatpush1.msra.mxu0 0.0
        %1456 = vmatprep.subr.mxu0 0.0
        %1457 = vmatpush1.msra.mxu0 0.0
        %1458 = vmatprep.subr.mxu0 0.0
        %1459 = vmatpush1.msra.mxu0 0.0
        %1460 = vmatprep.subr.mxu0 0.0
        %1461 = vmatpush1.msra.mxu0 0.0
        %1462 = vmatprep.subr.mxu0 0.0
        %1463 = vmatpush1.msra.mxu0 0.0
        %1464 = vmatprep.subr.mxu0 0.0
        %1465 = vmatpush1.msra.mxu0 0.0
        %1466 = vmatprep.subr.mxu0 0.0
        %1467 = vmatpush1.msra.mxu0 0.0
        %1468 = vmatprep.subr.mxu0 0.0
        %1469 = vmatpush1.msra.mxu0 0.0
        %1470 = vmatprep.subr.mxu0 0.0
        %1471 = vmatpush1.msra.mxu0 0.0
        %1472 = vmatprep.subr.mxu0 0.0
        %1473 = vmatpush1.msra.mxu0 0.0
        %1474 = vmatprep.subr.mxu0 0.0
        %1475 = vmatpush1.msra.mxu0 0.0
        %1476 = vmatprep.subr.mxu0 0.0
        %1477 = vmatpush1.msra.mxu0 0.0
        %1478 = vmatprep.subr.mxu0 0.0
        %1479 = vmatpush1.msra.mxu0 0.0
        %1480 = vmatprep.subr.mxu0 0.0
        %1481 = vmatpush1.msra.mxu0 0.0
        %1482 = vmatprep.subr.mxu0 0.0
        %1483 = vmatpush1.msra.mxu0 0.0
        %1484 = vmatprep.subr.mxu0 0.0
        %1485 = vmatpush1.msra.mxu0 0.0
        %1486 = vmatprep.subr.mxu0 0.0
        %1487 = vmatpush1.msra.mxu0 0.0
        %1488 = vmatprep.subr.mxu0 0.0
        %1489 = vmatpush1.msra.mxu0 0.0
        %1490 = vmatprep.subr.mxu0 0.0
        %1491 = vmatpush1.msra.mxu0 0.0
        %1492 = vmatprep.subr.mxu0 0.0
        %1493 = vmatpush1.msra.mxu0 0.0
        %1494 = vmatprep.subr.mxu0 0.0
        %1495 = vmatpush1.msra.mxu0 0.0
        %1496 = vmatprep.subr.mxu0 0.0
        %1497 = vmatpush1.msra.mxu0 0.0
        %1498 = vmatprep.subr.mxu0 0.0
        %1499 = vmatpush1.msra.mxu0 0.0
        %1500 = vmatprep.subr.mxu0 0.0
        %1501 = vmatpush1.msra.mxu0 0.0
        %1502 = vmatprep.subr.mxu0 0.0
        %1503 = vmatpush1.msra.mxu0 0.0
        %1504 = vmatprep.subr.mxu0 0.0
        %1505 = vmatpush1.msra.mxu0 0.0
        %1506 = vmatprep.subr.mxu0 0.0
        %1507 = vmatpush1.msra.mxu0 0.0
        %1508 = vmatprep.subr.mxu0 0.0
        %1509 = vmatpush1.msra.mxu0 0.0
        %1510 = vmatprep.subr.mxu0 0.0
        %1511 = vmatpush1.msra.mxu0 0.0
        %1512 = vmatprep.mubr.f32.mxu0 0.0
        %1513 = vmatmul.mubr.f32.gmra.mrb[0].mxu0 %v1443
        %v1514 = vpop.f32.mrb[0].mxu0
        %v1515 = vadd.f32 0.0, %v1514
        %v1516 = vpop.f32.mrb[0].mxu0
        %1517 = vmatprep.mubr.f32.mxu0 0.0
        %1518 = vmatmul.mubr.f32.gmra.mrb[0].mxu0 %v1446
        %v1519 = vpop.f32.mrb[0].mxu0
        %v1520 = vadd.f32 0.0, %v1519
        %v1521 = vpop.f32.mrb[0].mxu0
        %1522 = vdwg.mxu0
        %v1524 = vsel %vm758, %v1096, 0
        %v1527 = vsel %vm758, %v1101, 0
        %1529 = vmatprep.subr.mxu0 0.0
        %1530 = vmatpush1.msra.mxu0 %v1104
        %1531 = vmatprep.subr.mxu0 0.0
        %1532 = vmatpush1.msra.mxu0 %v1105
        %1533 = vmatprep.subr.mxu0 0.0
        %1534 = vmatpush1.msra.mxu0 0.0
        %1535 = vmatprep.subr.mxu0 0.0
        %1536 = vmatpush1.msra.mxu0 0.0
        %1537 = vmatprep.subr.mxu0 0.0
        %1538 = vmatpush1.msra.mxu0 0.0
        %1539 = vmatprep.subr.mxu0 0.0
        %1540 = vmatpush1.msra.mxu0 0.0
        %1541 = vmatprep.subr.mxu0 0.0
        %1542 = vmatpush1.msra.mxu0 0.0
        %1543 = vmatprep.subr.mxu0 0.0
        %1544 = vmatpush1.msra.mxu0 0.0
        %1545 = vmatprep.subr.mxu0 0.0
        %1546 = vmatpush1.msra.mxu0 0.0
        %1547 = vmatprep.subr.mxu0 0.0
        %1548 = vmatpush1.msra.mxu0 0.0
        %1549 = vmatprep.subr.mxu0 0.0
        %1550 = vmatpush1.msra.mxu0 0.0
        %1551 = vmatprep.subr.mxu0 0.0
        %1552 = vmatpush1.msra.mxu0 0.0
        %1553 = vmatprep.subr.mxu0 0.0
        %1554 = vmatpush1.msra.mxu0 0.0
        %1555 = vmatprep.subr.mxu0 0.0
        %1556 = vmatpush1.msra.mxu0 0.0
        %1557 = vmatprep.subr.mxu0 0.0
        %1558 = vmatpush1.msra.mxu0 0.0
        %1559 = vmatprep.subr.mxu0 0.0
        %1560 = vmatpush1.msra.mxu0 0.0
        %1561 = vmatprep.subr.mxu0 0.0
        %1562 = vmatpush1.msra.mxu0 0.0
        %1563 = vmatprep.subr.mxu0 0.0
        %1564 = vmatpush1.msra.mxu0 0.0
        %1565 = vmatprep.subr.mxu0 0.0
        %1566 = vmatpush1.msra.mxu0 0.0
        %1567 = vmatprep.subr.mxu0 0.0
        %1568 = vmatpush1.msra.mxu0 0.0
        %1569 = vmatprep.subr.mxu0 0.0
        %1570 = vmatpush1.msra.mxu0 0.0
        %1571 = vmatprep.subr.mxu0 0.0
        %1572 = vmatpush1.msra.mxu0 0.0
        %1573 = vmatprep.subr.mxu0 0.0
        %1574 = vmatpush1.msra.mxu0 0.0
        %1575 = vmatprep.subr.mxu0 0.0
        %1576 = vmatpush1.msra.mxu0 0.0
        %1577 = vmatprep.subr.mxu0 0.0
        %1578 = vmatpush1.msra.mxu0 0.0
        %1579 = vmatprep.subr.mxu0 0.0
        %1580 = vmatpush1.msra.mxu0 0.0
        %1581 = vmatprep.subr.mxu0 0.0
        %1582 = vmatpush1.msra.mxu0 0.0
        %1583 = vmatprep.subr.mxu0 0.0
        %1584 = vmatpush1.msra.mxu0 0.0
        %1585 = vmatprep.subr.mxu0 0.0
        %1586 = vmatpush1.msra.mxu0 0.0
        %1587 = vmatprep.subr.mxu0 0.0
        %1588 = vmatpush1.msra.mxu0 0.0
        %1589 = vmatprep.subr.mxu0 0.0
        %1590 = vmatpush1.msra.mxu0 0.0
        %1591 = vmatprep.subr.mxu0 0.0
        %1592 = vmatpush1.msra.mxu0 0.0
        %1593 = vmatprep.mubr.f32.mxu0 0.0
        %1594 = vmatmul.mubr.f32.gmra.mrb[0].mxu0 %v1524
        %v1595 = vpop.f32.mrb[0].mxu0
        %v1596 = vadd.f32 %v1515, %v1595
        %v1597 = vpop.f32.mrb[0].mxu0
        %1598 = vmatprep.mubr.f32.mxu0 0.0
        %1599 = vmatmul.mubr.f32.gmra.mrb[0].mxu0 %v1527
        %v1600 = vpop.f32.mrb[0].mxu0
        %v1601 = vadd.f32 %v1520, %v1600
        %v1602 = vpop.f32.mrb[0].mxu0
        %1603 = vdwg.mxu0
        %1604 = vrot.lane.b32.xlu0 %v569, 96
        %v1605 = vpop.permute.xlu0 %1604
        %1606 = vrot.lane.b32.xlu0 %v574, 96
        %v1607 = vpop.permute.xlu0 %1606
        %1608 = vrot.lane.b32.xlu0 %v659, 96
        %v1609 = vpop.permute.xlu0 %1608
        %1610 = vrot.lane.b32.xlu0 %v664, 96
        %v1611 = vpop.permute.xlu0 %1610
        %v1612 = vsel %vm758, %v1605, 0
        %v1614 = vsel %vm758, %v1607, 0
        %v1616 = vsel %vm758, %v1609, 0
        %v1618 = vsel %vm758, %v1611, 0
        %1620 = vmatprep.subr.mxu0 0.0
        %1621 = vmatpush1.xpose.msra.mxu0 %v1616
        %1622 = vmatprep.subr.mxu0 0.0
        %1623 = vmatpush1.xpose.msra.mxu0 %v1618
        %1624 = vmatprep.subr.mxu0 0.0
        %1625 = vmatpush1.xpose.msra.mxu0 0.0
        %1626 = vmatprep.subr.mxu0 0.0
        %1627 = vmatpush1.xpose.msra.mxu0 0.0
        %1628 = vmatprep.subr.mxu0 0.0
        %1629 = vmatpush1.xpose.msra.mxu0 0.0
        %1630 = vmatprep.subr.mxu0 0.0
        %1631 = vmatpush1.xpose.msra.mxu0 0.0
        %1632 = vmatprep.subr.mxu0 0.0
        %1633 = vmatpush1.xpose.msra.mxu0 0.0
        %1634 = vmatprep.subr.mxu0 0.0
        %1635 = vmatpush1.xpose.msra.mxu0 0.0
        %1636 = vmatprep.subr.mxu0 0.0
        %1637 = vmatpush1.xpose.msra.mxu0 0.0
        %1638 = vmatprep.subr.mxu0 0.0
        %1639 = vmatpush1.xpose.msra.mxu0 0.0
        %1640 = vmatprep.subr.mxu0 0.0
        %1641 = vmatpush1.xpose.msra.mxu0 0.0
        %1642 = vmatprep.subr.mxu0 0.0
        %1643 = vmatpush1.xpose.msra.mxu0 0.0
        %1644 = vmatprep.subr.mxu0 0.0
        %1645 = vmatpush1.xpose.msra.mxu0 0.0
        %1646 = vmatprep.subr.mxu0 0.0
        %1647 = vmatpush1.xpose.msra.mxu0 0.0
        %1648 = vmatprep.subr.mxu0 0.0
        %1649 = vmatpush1.xpose.msra.mxu0 0.0
        %1650 = vmatprep.subr.mxu0 0.0
        %1651 = vmatpush1.xpose.msra.mxu0 0.0
        %1652 = vmatprep.subr.mxu0 0.0
        %1653 = vmatpush1.xpose.msra.mxu0 0.0
        %1654 = vmatprep.subr.mxu0 0.0
        %1655 = vmatpush1.xpose.msra.mxu0 0.0
        %1656 = vmatprep.subr.mxu0 0.0
        %1657 = vmatpush1.xpose.msra.mxu0 0.0
        %1658 = vmatprep.subr.mxu0 0.0
        %1659 = vmatpush1.xpose.msra.mxu0 0.0
        %1660 = vmatprep.subr.mxu0 0.0
        %1661 = vmatpush1.xpose.msra.mxu0 0.0
        %1662 = vmatprep.subr.mxu0 0.0
        %1663 = vmatpush1.xpose.msra.mxu0 0.0
        %1664 = vmatprep.subr.mxu0 0.0
        %1665 = vmatpush1.xpose.msra.mxu0 0.0
        %1666 = vmatprep.subr.mxu0 0.0
        %1667 = vmatpush1.xpose.msra.mxu0 0.0
        %1668 = vmatprep.subr.mxu0 0.0
        %1669 = vmatpush1.xpose.msra.mxu0 0.0
        %1670 = vmatprep.subr.mxu0 0.0
        %1671 = vmatpush1.xpose.msra.mxu0 0.0
        %1672 = vmatprep.subr.mxu0 0.0
        %1673 = vmatpush1.xpose.msra.mxu0 0.0
        %1674 = vmatprep.subr.mxu0 0.0
        %1675 = vmatpush1.xpose.msra.mxu0 0.0
        %1676 = vmatprep.subr.mxu0 0.0
        %1677 = vmatpush1.xpose.msra.mxu0 0.0
        %1678 = vmatprep.subr.mxu0 0.0
        %1679 = vmatpush1.xpose.msra.mxu0 0.0
        %1680 = vmatprep.subr.mxu0 0.0
        %1681 = vmatpush1.xpose.msra.mxu0 0.0
        %1682 = vmatprep.subr.mxu0 0.0
        %1683 = vmatpush1.xpose.msra.mxu0 0.0
        %1684 = vmatprep.mubr.f32.mxu0 0.0
        %1685 = vmatmul.mubr.f32.gmra.mrb[0].mxu0 %v1612
        %v1686 = vpop.f32.mrb[0].mxu0
        %v1687 = vadd.f32 0.0, %v1686
        %v1688 = vpop.f32.mrb[0].mxu0
        %1689 = vmatprep.mubr.f32.mxu0 0.0
        %1690 = vmatmul.mubr.f32.gmra.mrb[0].mxu0 %v1614
        %v1691 = vpop.f32.mrb[0].mxu0
        %v1692 = vadd.f32 0.0, %v1691
        %v1693 = vpop.f32.mrb[0].mxu0
        %1694 = vdwg.mxu0
        %v1695 = vmul.f32 %v1687, 0.25
        %v1696 = vmul.f32 %v1692, 0.25
        %v1699 = vrot.slane %v1695, 1
        %v1700 = vrot.slane %v1696, 1
        %v1701 = vsel %vm850, %v1699, %v1700
        %v1703 = vsel %vm850, %v1700, 0.0
        %v1704 = vrot.slane %v1695, 7
        %v1705 = vrot.slane %v1696, 7
        %v1706 = vsel %vm856, %v1704, %v1705
        %v1708 = vsel %vm856, 0.0, %v1704
        %1710 = vrot.lane.b32.xlu0 %v1708, 115
        %v1711 = vpop.permute.xlu0 %1710
        %1712 = vrot.lane.b32.xlu0 %v1706, 115
        %v1713 = vpop.permute.xlu0 %1712
        %1716 = vrot.lane.b32.xlu0 %v1695, 3
        %v1717 = vpop.permute.xlu0 %1716
        %1718 = vrot.lane.b32.xlu0 %v1696, 3
        %v1719 = vpop.permute.xlu0 %1718
        %v1722 = vsel %vm875, %v1711, %v1717
        %v1723 = vsel %vm875, %v1713, %v1719
        %v1724 = vmul.f32 %v879, %v1722
        %v1725 = vmul.f32 %v879, %v1723
        %v1726 = vadd.f32 %v1724, 0.0
        %v1727 = vadd.f32 %v1725, 0.0
        %1728 = vrot.lane.b32.xlu0 %v1708, 114
        %v1729 = vpop.permute.xlu0 %1728
        %1730 = vrot.lane.b32.xlu0 %v1706, 114
        %v1731 = vpop.permute.xlu0 %1730
        %1734 = vrot.lane.b32.xlu0 %v1695, 2
        %v1735 = vpop.permute.xlu0 %1734
        %1736 = vrot.lane.b32.xlu0 %v1696, 2
        %v1737 = vpop.permute.xlu0 %1736
        %v1740 = vsel %vm896, %v1729, %v1735
        %v1741 = vsel %vm896, %v1731, %v1737
        %v1742 = vmul.f32 %v900, %v1740
        %v1743 = vmul.f32 %v900, %v1741
        %v1744 = vadd.f32 %v1726, %v1742
        %v1745 = vadd.f32 %v1727, %v1743
        %1746 = vrot.lane.b32.xlu0 %v1708, 113
        %v1747 = vpop.permute.xlu0 %1746
        %1748 = vrot.lane.b32.xlu0 %v1706, 113
        %v1749 = vpop.permute.xlu0 %1748
        %1752 = vrot.lane.b32.xlu0 %v1695, 1
        %v1753 = vpop.permute.xlu0 %1752
        %1754 = vrot.lane.b32.xlu0 %v1696, 1
        %v1755 = vpop.permute.xlu0 %1754
        %v1758 = vsel %vm917, %v1747, %v1753
        %v1759 = vsel %vm917, %v1749, %v1755
        %v1760 = vmul.f32 %v921, %v1758
        %v1761 = vmul.f32 %v921, %v1759
        %v1762 = vadd.f32 %v1744, %v1760
        %v1763 = vadd.f32 %v1745, %v1761
        %v1764 = vmul.f32 %v927, %v1695
        %v1765 = vmul.f32 %v927, %v1696
        %v1766 = vadd.f32 %v1762, %v1764
        %v1767 = vadd.f32 %v1763, %v1765
        %1768 = vrot.lane.b32.xlu0 %v1695, 127
        %v1769 = vpop.permute.xlu0 %1768
        %1770 = vrot.lane.b32.xlu0 %v1696, 127
        %v1771 = vpop.permute.xlu0 %1770
        %1775 = vrot.lane.b32.xlu0 %v1701, 15
        %v1776 = vpop.permute.xlu0 %1775
        %1777 = vrot.lane.b32.xlu0 %v1703, 15
        %v1778 = vpop.permute.xlu0 %1777
        %v1781 = vsel %vm945, %v1769, %v1776
        %v1782 = vsel %vm945, %v1771, %v1778
        %v1783 = vmul.f32 %v949, %v1781
        %v1784 = vmul.f32 %v949, %v1782
        %v1785 = vadd.f32 %v1766, %v1783
        %v1786 = vadd.f32 %v1767, %v1784
        %1787 = vrot.lane.b32.xlu0 %v1695, 126
        %v1788 = vpop.permute.xlu0 %1787
        %1789 = vrot.lane.b32.xlu0 %v1696, 126
        %v1790 = vpop.permute.xlu0 %1789
        %1793 = vrot.lane.b32.xlu0 %v1701, 14
        %v1794 = vpop.permute.xlu0 %1793
        %1795 = vrot.lane.b32.xlu0 %v1703, 14
        %v1796 = vpop.permute.xlu0 %1795
        %v1799 = vsel %vm966, %v1788, %v1794
        %v1800 = vsel %vm966, %v1790, %v1796
        %v1801 = vmul.f32 %v970, %v1799
        %v1802 = vmul.f32 %v970, %v1800
        %v1803 = vadd.f32 %v1785, %v1801
        %v1804 = vadd.f32 %v1786, %v1802
        %1805 = vrot.lane.b32.xlu0 %v1695, 125
        %v1806 = vpop.permute.xlu0 %1805
        %1807 = vrot.lane.b32.xlu0 %v1696, 125
        %v1808 = vpop.permute.xlu0 %1807
        %1811 = vrot.lane.b32.xlu0 %v1701, 13
        %v1812 = vpop.permute.xlu0 %1811
        %1813 = vrot.lane.b32.xlu0 %v1703, 13
        %v1814 = vpop.permute.xlu0 %1813
        %v1817 = vsel %vm987, %v1806, %v1812
        %v1818 = vsel %vm987, %v1808, %v1814
        %v1819 = vmul.f32 %v991, %v1817
        %v1820 = vmul.f32 %v991, %v1818
        %v1821 = vadd.f32 %v1803, %v1819
        %v1822 = vadd.f32 %v1804, %v1820
        %v1823 = vadd.f32 %v1821, %v996
        %v1824 = vadd.f32 %v1822, %v996
        %v1825 = vadd.f32 %v1695, %v1823
        %v1826 = vadd.f32 %v1696, %v1824
        %v1827 = vsel %vm758, %v1825, -inf
        %1828 = vmax.xlane.f32.xlu0 %v1827
        %v1829 = vpop.xlane.xlu0 %1828
        %v1830 = vsel %vm758, %v1826, -inf
        %1831 = vmax.xlane.f32.xlu0 %v1830
        %v1832 = vpop.xlane.xlu0 %1831
        %v1833 = vsub.f32 %v1825, %v1829
        %v1834 = vsub.f32 %v1826, %v1832
        %v1835 = vmul.f32 %v1833, 1.442695
        %v1836 = vpow.pop %v1835
        %v1837 = vmul.f32 %v1834, 1.442695
        %v1838 = vpow.pop %v1837
        %v1839 = vsel %vm758, %v1836, 0.0
        %1840 = vadd.xlane.f32.xlu0 %v1839
        %v1841 = vpop.xlane.xlu0 %1840
        %v1842 = vsel %vm758, %v1838, 0.0
        %1843 = vadd.xlane.f32.xlu0 %v1842
        %v1844 = vpop.xlane.xlu0 %1843
        %v1845 = vrcp.pop %v1841
        %v1846 = vmul.f32 %v1836, %v1845
        %v1847 = vrcp.pop %v1844
        %v1848 = vmul.f32 %v1838, %v1847
        %1849 = vrot.lane.b32.xlu0 %v749, 96
        %v1850 = vpop.permute.xlu0 %1849
        %1851 = vrot.lane.b32.xlu0 %v754, 96
        %v1852 = vpop.permute.xlu0 %1851
        %v1856 = vsel %vm758, %v1846, 0
        %v1859 = vsel %vm758, %v1848, 0
        %1861 = vmatprep.subr.mxu0 0.0
        %1862 = vmatpush1.msra.mxu0 %v1850
        %1863 = vmatprep.subr.mxu0 0.0
        %1864 = vmatpush1.msra.mxu0 %v1852
        %1865 = vmatprep.subr.mxu0 0.0
        %1866 = vmatpush1.msra.mxu0 0.0
        %1867 = vmatprep.subr.mxu0 0.0
        %1868 = vmatpush1.msra.mxu0 0.0
        %1869 = vmatprep.subr.mxu0 0.0
        %1870 = vmatpush1.msra.mxu0 0.0
        %1871 = vmatprep.subr.mxu0 0.0
        %1872 = vmatpush1.msra.mxu0 0.0
        %1873 = vmatprep.subr.mxu0 0.0
        %1874 = vmatpush1.msra.mxu0 0.0
        %1875 = vmatprep.subr.mxu0 0.0
        %1876 = vmatpush1.msra.mxu0 0.0
        %1877 = vmatprep.subr.mxu0 0.0
        %1878 = vmatpush1.msra.mxu0 0.0
        %1879 = vmatprep.subr.mxu0 0.0
        %1880 = vmatpush1.msra.mxu0 0.0
        %1881 = vmatprep.subr.mxu0 0.0
        %1882 = vmatpush1.msra.mxu0 0.0
        %1883 = vmatprep.subr.mxu0 0.0
        %1884 = vmatpush1.msra.mxu0 0.0
        %1885 = vmatprep.subr.mxu0 0.0
        %1886 = vmatpush1.msra.mxu0 0.0
        %1887 = vmatprep.subr.mxu0 0.0
        %1888 = vmatpush1.msra.mxu0 0.0
        %1889 = vmatprep.subr.mxu0 0.0
        %1890 = vmatpush1.msra.mxu0 0.0
        %1891 = vmatprep.subr.mxu0 0.0
        %1892 = vmatpush1.msra.mxu0 0.0
        %1893 = vmatprep.subr.mxu0 0.0
        %1894 = vmatpush1.msra.mxu0 0.0
        %1895 = vmatprep.subr.mxu0 0.0
        %1896 = vmatpush1.msra.mxu0 0.0
        %1897 = vmatprep.subr.mxu0 0.0
        %1898 = vmatpush1.msra.mxu0 0.0
        %1899 = vmatprep.subr.mxu0 0.0
        %1900 = vmatpush1.msra.mxu0 0.0
        %1901 = vmatprep.subr.mxu0 0.0
        %1902 = vmatpush1.msra.mxu0 0.0
        %1903 = vmatprep.subr.mxu0 0.0
        %1904 = vmatpush1.msra.mxu0 0.0
        %1905 = vmatprep.subr.mxu0 0.0
        %1906 = vmatpush1.msra.mxu0 0.0
        %1907 = vmatprep.subr.mxu0 0.0
        %1908 = vmatpush1.msra.mxu0 0.0
        %1909 = vmatprep.subr.mxu0 0.0
        %1910 = vmatpush1.msra.mxu0 0.0
        %1911 = vmatprep.subr.mxu0 0.0
        %1912 = vmatpush1.msra.mxu0 0.0
        %1913 = vmatprep.subr.mxu0 0.0
        %1914 = vmatpush1.msra.mxu0 0.0
        %1915 = vmatprep.subr.mxu0 0.0
        %1916 = vmatpush1.msra.mxu0 0.0
        %1917 = vmatprep.subr.mxu0 0.0
        %1918 = vmatpush1.msra.mxu0 0.0
        %1919 = vmatprep.subr.mxu0 0.0
        %1920 = vmatpush1.msra.mxu0 0.0
        %1921 = vmatprep.subr.mxu0 0.0
        %1922 = vmatpush1.msra.mxu0 0.0
        %1923 = vmatprep.subr.mxu0 0.0
        %1924 = vmatpush1.msra.mxu0 0.0
        %1925 = vmatprep.mubr.f32.mxu0 0.0
        %1926 = vmatmul.mubr.f32.gmra.mrb[0].mxu0 %v1856
        %v1927 = vpop.f32.mrb[0].mxu0
        %v1928 = vadd.f32 0.0, %v1927
        %v1929 = vpop.f32.mrb[0].mxu0
        %1930 = vmatprep.mubr.f32.mxu0 0.0
        %1931 = vmatmul.mubr.f32.gmra.mrb[0].mxu0 %v1859
        %v1932 = vpop.f32.mrb[0].mxu0
        %v1933 = vadd.f32 0.0, %v1932
        %v1934 = vpop.f32.mrb[0].mxu0
        %1935 = vdwg.mxu0
        %v1936 = vld [vmem:[#allocation12 + $0x20] sm:$0xff]
        %v1937 = vld [vmem:[#allocation12 + $0x28] sm:$0xff]
        %v1939 = vsel %vm758, %v1928, 0
        %v1942 = vsel %vm758, %v1933, 0
        %1944 = vmatprep.subr.mxu0 0.0
        %1945 = vmatpush1.msra.mxu0 %v1936
        %1946 = vmatprep.subr.mxu0 0.0
        %1947 = vmatpush1.msra.mxu0 %v1937
        %1948 = vmatprep.subr.mxu0 0.0
        %1949 = vmatpush1.msra.mxu0 0.0
        %1950 = vmatprep.subr.mxu0 0.0
        %1951 = vmatpush1.msra.mxu0 0.0
        %1952 = vmatprep.subr.mxu0 0.0
        %1953 = vmatpush1.msra.mxu0 0.0
        %1954 = vmatprep.subr.mxu0 0.0
        %1955 = vmatpush1.msra.mxu0 0.0
        %1956 = vmatprep.subr.mxu0 0.0
        %1957 = vmatpush1.msra.mxu0 0.0
        %1958 = vmatprep.subr.mxu0 0.0
        %1959 = vmatpush1.msra.mxu0 0.0
        %1960 = vmatprep.subr.mxu0 0.0
        %1961 = vmatpush1.msra.mxu0 0.0
        %1962 = vmatprep.subr.mxu0 0.0
        %1963 = vmatpush1.msra.mxu0 0.0
        %1964 = vmatprep.subr.mxu0 0.0
        %1965 = vmatpush1.msra.mxu0 0.0
        %1966 = vmatprep.subr.mxu0 0.0
        %1967 = vmatpush1.msra.mxu0 0.0
        %1968 = vmatprep.subr.mxu0 0.0
        %1969 = vmatpush1.msra.mxu0 0.0
        %1970 = vmatprep.subr.mxu0 0.0
        %1971 = vmatpush1.msra.mxu0 0.0
        %1972 = vmatprep.subr.mxu0 0.0
        %1973 = vmatpush1.msra.mxu0 0.0
        %1974 = vmatprep.subr.mxu0 0.0
        %1975 = vmatpush1.msra.mxu0 0.0
        %1976 = vmatprep.subr.mxu0 0.0
        %1977 = vmatpush1.msra.mxu0 0.0
        %1978 = vmatprep.subr.mxu0 0.0
        %1979 = vmatpush1.msra.mxu0 0.0
        %1980 = vmatprep.subr.mxu0 0.0
        %1981 = vmatpush1.msra.mxu0 0.0
        %1982 = vmatprep.subr.mxu0 0.0
        %1983 = vmatpush1.msra.mxu0 0.0
        %1984 = vmatprep.subr.mxu0 0.0
        %1985 = vmatpush1.msra.mxu0 0.0
        %1986 = vmatprep.subr.mxu0 0.0
        %1987 = vmatpush1.msra.mxu0 0.0
        %1988 = vmatprep.subr.mxu0 0.0
        %1989 = vmatpush1.msra.mxu0 0.0
        %1990 = vmatprep.subr.mxu0 0.0
        %1991 = vmatpush1.msra.mxu0 0.0
        %1992 = vmatprep.subr.mxu0 0.0
        %1993 = vmatpush1.msra.mxu0 0.0
        %1994 = vmatprep.subr.mxu0 0.0
        %1995 = vmatpush1.msra.mxu0 0.0
        %1996 = vmatprep.subr.mxu0 0.0
        %1997 = vmatpush1.msra.mxu0 0.0
        %1998 = vmatprep.subr.mxu0 0.0
        %1999 = vmatpush1.msra.mxu0 0.0
        %2000 = vmatprep.subr.mxu0 0.0
        %2001 = vmatpush1.msra.mxu0 0.0
        %2002 = vmatprep.subr.mxu0 0.0
        %2003 = vmatpush1.msra.mxu0 0.0
        %2004 = vmatprep.subr.mxu0 0.0
        %2005 = vmatpush1.msra.mxu0 0.0
        %2006 = vmatprep.subr.mxu0 0.0
        %2007 = vmatpush1.msra.mxu0 0.0
        %2008 = vmatprep.mubr.f32.mxu0 0.0
        %2009 = vmatmul.mubr.f32.gmra.mrb[0].mxu0 %v1939
        %v2010 = vpop.f32.mrb[0].mxu0
        %v2011 = vadd.f32 0.0, %v2010
        %v2012 = vpop.f32.mrb[0].mxu0
        %2013 = vmatprep.mubr.f32.mxu0 0.0
        %2014 = vmatmul.mubr.f32.gmra.mrb[0].mxu0 %v1942
        %v2015 = vpop.f32.mrb[0].mxu0
        %v2016 = vadd.f32 0.0, %v2015
        %v2017 = vpop.f32.mrb[0].mxu0
        %2018 = vdwg.mxu0
        %v2019 = vadd.f32 %v1596, %v2011
        %v2020 = vadd.f32 %v1601, %v2016
        %2021 = vrot.lane.b32.xlu0 %v569, 80
        %v2022 = vpop.permute.xlu0 %2021
        %2023 = vrot.lane.b32.xlu0 %v574, 80
        %v2024 = vpop.permute.xlu0 %2023
        %2025 = vrot.lane.b32.xlu0 %v659, 80
        %v2026 = vpop.permute.xlu0 %2025
        %2027 = vrot.lane.b32.xlu0 %v664, 80
        %v2028 = vpop.permute.xlu0 %2027
        %v2029 = vsel %vm758, %v2022, 0
        %v2031 = vsel %vm758, %v2024, 0
        %v2033 = vsel %vm758, %v2026, 0
        %v2035 = vsel %vm758, %v2028, 0
        %2037 = vmatprep.subr.mxu0 0.0
        %2038 = vmatpush1.xpose.msra.mxu0 %v2033
        %2039 = vmatprep.subr.mxu0 0.0
        %2040 = vmatpush1.xpose.msra.mxu0 %v2035
        %2041 = vmatprep.subr.mxu0 0.0
        %2042 = vmatpush1.xpose.msra.mxu0 0.0
        %2043 = vmatprep.subr.mxu0 0.0
        %2044 = vmatpush1.xpose.msra.mxu0 0.0
        %2045 = vmatprep.subr.mxu0 0.0
        %2046 = vmatpush1.xpose.msra.mxu0 0.0
        %2047 = vmatprep.subr.mxu0 0.0
        %2048 = vmatpush1.xpose.msra.mxu0 0.0
        %2049 = vmatprep.subr.mxu0 0.0
        %2050 = vmatpush1.xpose.msra.mxu0 0.0
        %2051 = vmatprep.subr.mxu0 0.0
        %2052 = vmatpush1.xpose.msra.mxu0 0.0
        %2053 = vmatprep.subr.mxu0 0.0
        %2054 = vmatpush1.xpose.msra.mxu0 0.0
        %2055 = vmatprep.subr.mxu0 0.0
        %2056 = vmatpush1.xpose.msra.mxu0 0.0
        %2057 = vmatprep.subr.mxu0 0.0
        %2058 = vmatpush1.xpose.msra.mxu0 0.0
        %2059 = vmatprep.subr.mxu0 0.0
        %2060 = vmatpush1.xpose.msra.mxu0 0.0
        %2061 = vmatprep.subr.mxu0 0.0
        %2062 = vmatpush1.xpose.msra.mxu0 0.0
        %2063 = vmatprep.subr.mxu0 0.0
        %2064 = vmatpush1.xpose.msra.mxu0 0.0
        %2065 = vmatprep.subr.mxu0 0.0
        %2066 = vmatpush1.xpose.msra.mxu0 0.0
        %2067 = vmatprep.subr.mxu0 0.0
        %2068 = vmatpush1.xpose.msra.mxu0 0.0
        %2069 = vmatprep.subr.mxu0 0.0
        %2070 = vmatpush1.xpose.msra.mxu0 0.0
        %2071 = vmatprep.subr.mxu0 0.0
        %2072 = vmatpush1.xpose.msra.mxu0 0.0
        %2073 = vmatprep.subr.mxu0 0.0
        %2074 = vmatpush1.xpose.msra.mxu0 0.0
        %2075 = vmatprep.subr.mxu0 0.0
        %2076 = vmatpush1.xpose.msra.mxu0 0.0
        %2077 = vmatprep.subr.mxu0 0.0
        %2078 = vmatpush1.xpose.msra.mxu0 0.0
        %2079 = vmatprep.subr.mxu0 0.0
        %2080 = vmatpush1.xpose.msra.mxu0 0.0
        %2081 = vmatprep.subr.mxu0 0.0
        %2082 = vmatpush1.xpose.msra.mxu0 0.0
        %2083 = vmatprep.subr.mxu0 0.0
        %2084 = vmatpush1.xpose.msra.mxu0 0.0
        %2085 = vmatprep.subr.mxu0 0.0
        %2086 = vmatpush1.xpose.msra.mxu0 0.0
        %2087 = vmatprep.subr.mxu0 0.0
        %2088 = vmatpush1.xpose.msra.mxu0 0.0
        %2089 = vmatprep.subr.mxu0 0.0
        %2090 = vmatpush1.xpose.msra.mxu0 0.0
        %2091 = vmatprep.subr.mxu0 0.0
        %2092 = vmatpush1.xpose.msra.mxu0 0.0
        %2093 = vmatprep.subr.mxu0 0.0
        %2094 = vmatpush1.xpose.msra.mxu0 0.0
        %2095 = vmatprep.subr.mxu0 0.0
        %2096 = vmatpush1.xpose.msra.mxu0 0.0
        %2097 = vmatprep.subr.mxu0 0.0
        %2098 = vmatpush1.xpose.msra.mxu0 0.0
        %2099 = vmatprep.subr.mxu0 0.0
        %2100 = vmatpush1.xpose.msra.mxu0 0.0
        %2101 = vmatprep.mubr.f32.mxu0 0.0
        %2102 = vmatmul.mubr.f32.gmra.mrb[0].mxu0 %v2029
        %v2103 = vpop.f32.mrb[0].mxu0
        %v2104 = vadd.f32 0.0, %v2103
        %v2105 = vpop.f32.mrb[0].mxu0
        %2106 = vmatprep.mubr.f32.mxu0 0.0
        %2107 = vmatmul.mubr.f32.gmra.mrb[0].mxu0 %v2031
        %v2108 = vpop.f32.mrb[0].mxu0
        %v2109 = vadd.f32 0.0, %v2108
        %v2110 = vpop.f32.mrb[0].mxu0
        %2111 = vdwg.mxu0
        %v2112 = vmul.f32 %v2104, 0.25
        %v2113 = vmul.f32 %v2109, 0.25
        %v2116 = vrot.slane %v2112, 1
        %v2117 = vrot.slane %v2113, 1
        %v2118 = vsel %vm850, %v2116, %v2117
        %v2120 = vsel %vm850, %v2117, 0.0
        %v2121 = vrot.slane %v2112, 7
        %v2122 = vrot.slane %v2113, 7
        %v2123 = vsel %vm856, %v2121, %v2122
        %v2125 = vsel %vm856, 0.0, %v2121
        %2127 = vrot.lane.b32.xlu0 %v2125, 115
        %v2128 = vpop.permute.xlu0 %2127
        %2129 = vrot.lane.b32.xlu0 %v2123, 115
        %v2130 = vpop.permute.xlu0 %2129
        %2133 = vrot.lane.b32.xlu0 %v2112, 3
        %v2134 = vpop.permute.xlu0 %2133
        %2135 = vrot.lane.b32.xlu0 %v2113, 3
        %v2136 = vpop.permute.xlu0 %2135
        %v2139 = vsel %vm875, %v2128, %v2134
        %v2140 = vsel %vm875, %v2130, %v2136
        %v2141 = vmul.f32 %v879, %v2139
        %v2142 = vmul.f32 %v879, %v2140
        %v2143 = vadd.f32 %v2141, 0.0
        %v2144 = vadd.f32 %v2142, 0.0
        %2145 = vrot.lane.b32.xlu0 %v2125, 114
        %v2146 = vpop.permute.xlu0 %2145
        %2147 = vrot.lane.b32.xlu0 %v2123, 114
        %v2148 = vpop.permute.xlu0 %2147
        %2151 = vrot.lane.b32.xlu0 %v2112, 2
        %v2152 = vpop.permute.xlu0 %2151
        %2153 = vrot.lane.b32.xlu0 %v2113, 2
        %v2154 = vpop.permute.xlu0 %2153
        %v2157 = vsel %vm896, %v2146, %v2152
        %v2158 = vsel %vm896, %v2148, %v2154
        %v2159 = vmul.f32 %v900, %v2157
        %v2160 = vmul.f32 %v900, %v2158
        %v2161 = vadd.f32 %v2143, %v2159
        %v2162 = vadd.f32 %v2144, %v2160
        %2163 = vrot.lane.b32.xlu0 %v2125, 113
        %v2164 = vpop.permute.xlu0 %2163
        %2165 = vrot.lane.b32.xlu0 %v2123, 113
        %v2166 = vpop.permute.xlu0 %2165
        %2169 = vrot.lane.b32.xlu0 %v2112, 1
        %v2170 = vpop.permute.xlu0 %2169
        %2171 = vrot.lane.b32.xlu0 %v2113, 1
        %v2172 = vpop.permute.xlu0 %2171
        %v2175 = vsel %vm917, %v2164, %v2170
        %v2176 = vsel %vm917, %v2166, %v2172
        %v2177 = vmul.f32 %v921, %v2175
        %v2178 = vmul.f32 %v921, %v2176
        %v2179 = vadd.f32 %v2161, %v2177
        %v2180 = vadd.f32 %v2162, %v2178
        %v2181 = vmul.f32 %v927, %v2112
        %v2182 = vmul.f32 %v927, %v2113
        %v2183 = vadd.f32 %v2179, %v2181
        %v2184 = vadd.f32 %v2180, %v2182
        %2185 = vrot.lane.b32.xlu0 %v2112, 127
        %v2186 = vpop.permute.xlu0 %2185
        %2187 = vrot.lane.b32.xlu0 %v2113, 127
        %v2188 = vpop.permute.xlu0 %2187
        %2192 = vrot.lane.b32.xlu0 %v2118, 15
        %v2193 = vpop.permute.xlu0 %2192
        %2194 = vrot.lane.b32.xlu0 %v2120, 15
        %v2195 = vpop.permute.xlu0 %2194
        %v2198 = vsel %vm945, %v2186, %v2193
        %v2199 = vsel %vm945, %v2188, %v2195
        %v2200 = vmul.f32 %v949, %v2198
        %v2201 = vmul.f32 %v949, %v2199
        %v2202 = vadd.f32 %v2183, %v2200
        %v2203 = vadd.f32 %v2184, %v2201
        %2204 = vrot.lane.b32.xlu0 %v2112, 126
        %v2205 = vpop.permute.xlu0 %2204
        %2206 = vrot.lane.b32.xlu0 %v2113, 126
        %v2207 = vpop.permute.xlu0 %2206
        %2210 = vrot.lane.b32.xlu0 %v2118, 14
        %v2211 = vpop.permute.xlu0 %2210
        %2212 = vrot.lane.b32.xlu0 %v2120, 14
        %v2213 = vpop.permute.xlu0 %2212
        %v2216 = vsel %vm966, %v2205, %v2211
        %v2217 = vsel %vm966, %v2207, %v2213
        %v2218 = vmul.f32 %v970, %v2216
        %v2219 = vmul.f32 %v970, %v2217
        %v2220 = vadd.f32 %v2202, %v2218
        %v2221 = vadd.f32 %v2203, %v2219
        %2222 = vrot.lane.b32.xlu0 %v2112, 125
        %v2223 = vpop.permute.xlu0 %2222
        %2224 = vrot.lane.b32.xlu0 %v2113, 125
        %v2225 = vpop.permute.xlu0 %2224
        %2228 = vrot.lane.b32.xlu0 %v2118, 13
        %v2229 = vpop.permute.xlu0 %2228
        %2230 = vrot.lane.b32.xlu0 %v2120, 13
        %v2231 = vpop.permute.xlu0 %2230
        %v2234 = vsel %vm987, %v2223, %v2229
        %v2235 = vsel %vm987, %v2225, %v2231
        %v2236 = vmul.f32 %v991, %v2234
        %v2237 = vmul.f32 %v991, %v2235
        %v2238 = vadd.f32 %v2220, %v2236
        %v2239 = vadd.f32 %v2221, %v2237
        %v2240 = vadd.f32 %v2238, %v996
        %v2241 = vadd.f32 %v2239, %v996
        %v2242 = vadd.f32 %v2112, %v2240
        %v2243 = vadd.f32 %v2113, %v2241
        %v2244 = vsel %vm758, %v2242, -inf
        %2245 = vmax.xlane.f32.xlu0 %v2244
        %v2246 = vpop.xlane.xlu0 %2245
        %v2247 = vsel %vm758, %v2243, -inf
        %2248 = vmax.xlane.f32.xlu0 %v2247
        %v2249 = vpop.xlane.xlu0 %2248
        %v2250 = vsub.f32 %v2242, %v2246
        %v2251 = vsub.f32 %v2243, %v2249
        %v2252 = vmul.f32 %v2250, 1.442695
        %v2253 = vpow.pop %v2252
        %v2254 = vmul.f32 %v2251, 1.442695
        %v2255 = vpow.pop %v2254
        %v2256 = vsel %vm758, %v2253, 0.0
        %2257 = vadd.xlane.f32.xlu0 %v2256
        %v2258 = vpop.xlane.xlu0 %2257
        %v2259 = vsel %vm758, %v2255, 0.0
        %2260 = vadd.xlane.f32.xlu0 %v2259
        %v2261 = vpop.xlane.xlu0 %2260
        %v2262 = vrcp.pop %v2258
        %v2263 = vmul.f32 %v2253, %v2262
        %v2264 = vrcp.pop %v2261
        %v2265 = vmul.f32 %v2255, %v2264
        %2266 = vrot.lane.b32.xlu0 %v749, 80
        %v2267 = vpop.permute.xlu0 %2266
        %2268 = vrot.lane.b32.xlu0 %v754, 80
        %v2269 = vpop.permute.xlu0 %2268
        %v2273 = vsel %vm758, %v2263, 0
        %v2276 = vsel %vm758, %v2265, 0
        %2278 = vmatprep.subr.mxu0 0.0
        %2279 = vmatpush1.msra.mxu0 %v2267
        %2280 = vmatprep.subr.mxu0 0.0
        %2281 = vmatpush1.msra.mxu0 %v2269
        %2282 = vmatprep.subr.mxu0 0.0
        %2283 = vmatpush1.msra.mxu0 0.0
        %2284 = vmatprep.subr.mxu0 0.0
        %2285 = vmatpush1.msra.mxu0 0.0
        %2286 = vmatprep.subr.mxu0 0.0
        %2287 = vmatpush1.msra.mxu0 0.0
        %2288 = vmatprep.subr.mxu0 0.0
        %2289 = vmatpush1.msra.mxu0 0.0
        %2290 = vmatprep.subr.mxu0 0.0
        %2291 = vmatpush1.msra.mxu0 0.0
        %2292 = vmatprep.subr.mxu0 0.0
        %2293 = vmatpush1.msra.mxu0 0.0
        %2294 = vmatprep.subr.mxu0 0.0
        %2295 = vmatpush1.msra.mxu0 0.0
        %2296 = vmatprep.subr.mxu0 0.0
        %2297 = vmatpush1.msra.mxu0 0.0
        %2298 = vmatprep.subr.mxu0 0.0
        %2299 = vmatpush1.msra.mxu0 0.0
        %2300 = vmatprep.subr.mxu0 0.0
        %2301 = vmatpush1.msra.mxu0 0.0
        %2302 = vmatprep.subr.mxu0 0.0
        %2303 = vmatpush1.msra.mxu0 0.0
        %2304 = vmatprep.subr.mxu0 0.0
        %2305 = vmatpush1.msra.mxu0 0.0
        %2306 = vmatprep.subr.mxu0 0.0
        %2307 = vmatpush1.msra.mxu0 0.0
        %2308 = vmatprep.subr.mxu0 0.0
        %2309 = vmatpush1.msra.mxu0 0.0
        %2310 = vmatprep.subr.mxu0 0.0
        %2311 = vmatpush1.msra.mxu0 0.0
        %2312 = vmatprep.subr.mxu0 0.0
        %2313 = vmatpush1.msra.mxu0 0.0
        %2314 = vmatprep.subr.mxu0 0.0
        %2315 = vmatpush1.msra.mxu0 0.0
        %2316 = vmatprep.subr.mxu0 0.0
        %2317 = vmatpush1.msra.mxu0 0.0
        %2318 = vmatprep.subr.mxu0 0.0
        %2319 = vmatpush1.msra.mxu0 0.0
        %2320 = vmatprep.subr.mxu0 0.0
        %2321 = vmatpush1.msra.mxu0 0.0
        %2322 = vmatprep.subr.mxu0 0.0
        %2323 = vmatpush1.msra.mxu0 0.0
        %2324 = vmatprep.subr.mxu0 0.0
        %2325 = vmatpush1.msra.mxu0 0.0
        %2326 = vmatprep.subr.mxu0 0.0
        %2327 = vmatpush1.msra.mxu0 0.0
        %2328 = vmatprep.subr.mxu0 0.0
        %2329 = vmatpush1.msra.mxu0 0.0
        %2330 = vmatprep.subr.mxu0 0.0
        %2331 = vmatpush1.msra.mxu0 0.0
        %2332 = vmatprep.subr.mxu0 0.0
        %2333 = vmatpush1.msra.mxu0 0.0
        %2334 = vmatprep.subr.mxu0 0.0
        %2335 = vmatpush1.msra.mxu0 0.0
        %2336 = vmatprep.subr.mxu0 0.0
        %2337 = vmatpush1.msra.mxu0 0.0
        %2338 = vmatprep.subr.mxu0 0.0
        %2339 = vmatpush1.msra.mxu0 0.0
        %2340 = vmatprep.subr.mxu0 0.0
        %2341 = vmatpush1.msra.mxu0 0.0
        %2342 = vmatprep.mubr.f32.mxu0 0.0
        %2343 = vmatmul.mubr.f32.gmra.mrb[0].mxu0 %v2273
        %v2344 = vpop.f32.mrb[0].mxu0
        %v2345 = vadd.f32 0.0, %v2344
        %v2346 = vpop.f32.mrb[0].mxu0
        %2347 = vmatprep.mubr.f32.mxu0 0.0
        %2348 = vmatmul.mubr.f32.gmra.mrb[0].mxu0 %v2276
        %v2349 = vpop.f32.mrb[0].mxu0
        %v2350 = vadd.f32 0.0, %v2349
        %v2351 = vpop.f32.mrb[0].mxu0
        %2352 = vdwg.mxu0
        %v2353 = vld [vmem:[#allocation12 + $0x30] sm:$0xff]
        %v2354 = vld [vmem:[#allocation12 + $0x38] sm:$0xff]
        %v2356 = vsel %vm758, %v2345, 0
        %v2359 = vsel %vm758, %v2350, 0
        %2361 = vmatprep.subr.mxu0 0.0
        %2362 = vmatpush1.msra.mxu0 %v2353
        %2363 = vmatprep.subr.mxu0 0.0
        %2364 = vmatpush1.msra.mxu0 %v2354
        %2365 = vmatprep.subr.mxu0 0.0
        %2366 = vmatpush1.msra.mxu0 0.0
        %2367 = vmatprep.subr.mxu0 0.0
        %2368 = vmatpush1.msra.mxu0 0.0
        %2369 = vmatprep.subr.mxu0 0.0
        %2370 = vmatpush1.msra.mxu0 0.0
        %2371 = vmatprep.subr.mxu0 0.0
        %2372 = vmatpush1.msra.mxu0 0.0
        %2373 = vmatprep.subr.mxu0 0.0
        %2374 = vmatpush1.msra.mxu0 0.0
        %2375 = vmatprep.subr.mxu0 0.0
        %2376 = vmatpush1.msra.mxu0 0.0
        %2377 = vmatprep.subr.mxu0 0.0
        %2378 = vmatpush1.msra.mxu0 0.0
        %2379 = vmatprep.subr.mxu0 0.0
        %2380 = vmatpush1.msra.mxu0 0.0
        %2381 = vmatprep.subr.mxu0 0.0
        %2382 = vmatpush1.msra.mxu0 0.0
        %2383 = vmatprep.subr.mxu0 0.0
        %2384 = vmatpush1.msra.mxu0 0.0
        %2385 = vmatprep.subr.mxu0 0.0
        %2386 = vmatpush1.msra.mxu0 0.0
        %2387 = vmatprep.subr.mxu0 0.0
        %2388 = vmatpush1.msra.mxu0 0.0
        %2389 = vmatprep.subr.mxu0 0.0
        %2390 = vmatpush1.msra.mxu0 0.0
        %2391 = vmatprep.subr.mxu0 0.0
        %2392 = vmatpush1.msra.mxu0 0.0
        %2393 = vmatprep.subr.mxu0 0.0
        %2394 = vmatpush1.msra.mxu0 0.0
        %2395 = vmatprep.subr.mxu0 0.0
        %2396 = vmatpush1.msra.mxu0 0.0
        %2397 = vmatprep.subr.mxu0 0.0
        %2398 = vmatpush1.msra.mxu0 0.0
        %2399 = vmatprep.subr.mxu0 0.0
        %2400 = vmatpush1.msra.mxu0 0.0
        %2401 = vmatprep.subr.mxu0 0.0
        %2402 = vmatpush1.msra.mxu0 0.0
        %2403 = vmatprep.subr.mxu0 0.0
        %2404 = vmatpush1.msra.mxu0 0.0
        %2405 = vmatprep.subr.mxu0 0.0
        %2406 = vmatpush1.msra.mxu0 0.0
        %2407 = vmatprep.subr.mxu0 0.0
        %2408 = vmatpush1.msra.mxu0 0.0
        %2409 = vmatprep.subr.mxu0 0.0
        %2410 = vmatpush1.msra.mxu0 0.0
        %2411 = vmatprep.subr.mxu0 0.0
        %2412 = vmatpush1.msra.mxu0 0.0
        %2413 = vmatprep.subr.mxu0 0.0
        %2414 = vmatpush1.msra.mxu0 0.0
        %2415 = vmatprep.subr.mxu0 0.0
        %2416 = vmatpush1.msra.mxu0 0.0
        %2417 = vmatprep.subr.mxu0 0.0
        %2418 = vmatpush1.msra.mxu0 0.0
        %2419 = vmatprep.subr.mxu0 0.0
        %2420 = vmatpush1.msra.mxu0 0.0
        %2421 = vmatprep.subr.mxu0 0.0
        %2422 = vmatpush1.msra.mxu0 0.0
        %2423 = vmatprep.subr.mxu0 0.0
        %2424 = vmatpush1.msra.mxu0 0.0
        %2425 = vmatprep.mubr.f32.mxu0 0.0
        %2426 = vmatmul.mubr.f32.gmra.mrb[0].mxu0 %v2356
        %v2427 = vpop.f32.mrb[0].mxu0
        %v2428 = vadd.f32 0.0, %v2427
        %v2429 = vpop.f32.mrb[0].mxu0
        %2430 = vmatprep.mubr.f32.mxu0 0.0
        %2431 = vmatmul.mubr.f32.gmra.mrb[0].mxu0 %v2359
        %v2432 = vpop.f32.mrb[0].mxu0
        %v2433 = vadd.f32 0.0, %v2432
        %v2434 = vpop.f32.mrb[0].mxu0
        %2435 = vdwg.mxu0
        %v2436 = vadd.f32 %v2019, %v2428
        %v2437 = vadd.f32 %v2020, %v2433
        %v2438 = vld [vmem:[%s8] sm:$0x1]
        %v2440 = vlaneseq
        %v2441 = vshrl.u32 %v2440, 7
        %v2442 = vsub.s32 0, %v2441
        %v2443 = vrot.slane %v2438, %v2442
        %v2445 = vadd.f32 %v2436, %v2443
        %v2446 = vadd.f32 %v2437, %v2443
        %2447 = vst.msk [vmem:[%s477] sm:$0xff] %vm495, %v2445
        %2448 = vst.msk [vmem:[%s477 + $0x8] sm:$0xff] %vm495, %v2446
        %s2449 = sand.u32 %s276, 1
        %s2450 = scalar_lea.sflag [#allocation5], %s2449
        %s2451 = sand.u32 %s276, 1
        %s2452 = smul.addr %s2451, 16
        %s2453 = scalar_lea.vmem [#allocation14], %s2452
        // Predicated region
        $region89: #{tpu_custom_call.1} parent=63 // pred_check
          %p2454 = pneg %p286
        $region90: #{tpu_custom_call.1} parent=63 // pred_check_branch
          %2456 = sbr.rel (%p2454) target = $region92
        $region91: #{tpu_custom_call.1} parent=63 // pred_region
          %s2458 = ssub.s32 256, 256
          %2459 = vsyncadd %s2450, %s2458
          %s2460 = smul.addr %s32, 2
          %s2461 = smul.addr %s2460, 128
          %s2462 = scalar_lea.hbm %s11, %s2461
          %s2463 = sshll.u32 %s2453, 4
          %s2464 = int_to_ptr.vmem [resolvable:$true] %s2463
          %2469 = dma.vmem_to_hbm [thread:$0]  %s2464, 256, %s2462, %s2450, 128, 128, 8
        $region92: #{tpu_custom_call.1} parent=63 // pred_fallthru
          _
      $region64: #{tpu_custom_call.1} parent=5 // pred_fallthru
        _
      %p2470 = scmp.le.s32.totalorder 2, %s27
      // Predicated region
      $region93: #{tpu_custom_call.1} parent=5 // pred_check
        %p2471 = pneg %p2470
      $region94: #{tpu_custom_call.1} parent=5 // pred_check_branch
        %2473 = sbr.rel (%p2471) target = $region96
      $region95: #{tpu_custom_call.1} parent=5 // pred_region
        %s2474 = ssub.s32 %s27, 2
        // Predicated region
        $region97: #{tpu_custom_call.1} parent=95 // pred_check
          %p2475 = pneg %p292
        $region98: #{tpu_custom_call.1} parent=95 // pred_check_branch
          %2477 = sbr.rel (%p2475) target = $region100
        $region99: #{tpu_custom_call.1} parent=95 // pred_region
          %s2478 = sand.u32 %s277, 1
          %s2479 = scalar_lea.sflag [#allocation5], %s2478
          %s2480 = sand.u32 %s277, 1
          %s2481 = smul.addr %s2480, 16
          %s2482 = scalar_lea.vmem [#allocation14], %s2481
          %2483 = dma.done %s2479, 256
        $region100: #{tpu_custom_call.1} parent=95 // pred_fallthru
          _
      $region96: #{tpu_custom_call.1} parent=5 // pred_fallthru
        _
    $region6: #{tpu_custom_call.1} parent=1 // loop_footer
      %s31 = sadd.s32 1, %s27
    $region7: #{tpu_custom_call.1} parent=1 // loop_footer_branch
      %26 = sbr.rel target = $region3
    $region8: #{tpu_custom_call.1} parent=1 // loop_exit
      _
    %2484 = vsyncpa [#allocation4], 1
    %s2485 = scalar_lea.sflag [#allocation4], 1
    %2486 = vsyncpa %s2485, 1
    %2487 = vsyncpa [#allocation8], 1
    %2488 = vsyncpa [#allocation11], 1
    %2489 = vsyncpa [#allocation5], 1
    %s2490 = scalar_lea.sflag [#allocation5], 1
    %2491 = vsyncpa %s2490, 1
    %2492 = vsyncpa [#allocation6], 1
    %s2493 = scalar_lea.sflag [#allocation6], 1
    %2494 = vsyncpa %s2493, 1

</llo_original>
